<compile_context>
chip_gen: v6e
topology: v6e:2x2x1
jax: 0.10.0
libtpu: 0.0.40
codegen_flags: <defaults>
</compile_context>

<pallas_src>
import numpy as np
import jax
import jax.numpy as jnp
from jax.experimental import pallas as pl
from jax.experimental.pallas import tpu as pltpu

# KAN spline grid: torch.linspace(-1, 1, 5)
_GRID_VALS = (-1.0, -0.5, 0.0, 0.5, 1.0)
_KAN_LAYERS = (4, 64, 32, 16, 4)
_GRID_SIZE = 5


# ----------------------------------------------------------------------------- kernel

def _kan_layer_T(hT, wt_ref, bt_ref):
    """One SimpleKANLayer, batch-on-lanes.

    hT:      [din_pad, Bt]  f32 (current activation, batch on lane axis)
    wt_ref:  [dout, 5*din_pad]  packed weights (scale & exp(-5 g^2) folded in)
    bt_ref:  [dout, 1]          bias (= sum_i shift[i, :])
    returns  [dout, Bt]
    """
    xn = jnp.tanh(hT)
    base = jnp.exp(-5.0 * xn * xn)   # g = 0 plane;  exp(-5 g^2) folded into weights
    ep = jnp.exp(5.0 * xn)           # exp(+5 t)
    em = jnp.exp(-5.0 * xn)          # exp(-5 t)
    # Planes in grid order (-1, -0.5, 0, 0.5, 1); concat along the contraction axis.
    basisT = jnp.concatenate(
        [base * (em * em),   # g = -1.0
         base * em,          # g = -0.5
         base,               # g =  0.0
         base * ep,          # g = +0.5
         base * (ep * ep)],  # g = +1.0
        axis=0)                                              # [5*din_pad, Bt]
    out = jnp.dot(wt_ref[...], basisT,
                  preferred_element_type=jnp.float32)        # [dout, Bt]  (single MXU pass)
    return out + bt_ref[...]                                 # lane-broadcast bias


def _nkat_kernel(xT_ref,
                 wt1, bt1, wt2, bt2, wt3, bt3, wt4, bt4,
                 out_ref):
    h = xT_ref[...]                                          # [8, Bt] (coords 4..7 are zero pad)
    # kan_stack = KAN(4->64), Tanh, KAN(64->32), Tanh, KAN(32->16), Tanh, KAN(16->4)
    h = jnp.tanh(_kan_layer_T(h, wt1, bt1))
    h = jnp.tanh(_kan_layer_T(h, wt2, bt2))
    h = jnp.tanh(_kan_layer_T(h, wt3, bt3))
    # Layer 4 has the gamma contraction folded in -> rows 0..3 = Re, rows 4..7 = Im.
    out_ref[...] = _kan_layer_T(h, wt4, bt4)                 # [8, Bt]


# ------------------------------------------------------------------------ host packing

def _make_gamma_sum():
    """sum over mu of Dirac gamma matrices, as in _create_gamma_matrices()."""
    sigma = np.zeros((3, 2, 2), dtype=np.complex64)
    sigma[0] = np.array([[0, 1], [1, 0]], dtype=np.complex64)
    sigma[1] = np.array([[0, -1j], [1j, 0]], dtype=np.complex64)
    sigma[2] = np.array([[1, 0], [0, -1]], dtype=np.complex64)
    I2 = np.eye(2, dtype=np.complex64)
    gamma = np.zeros((4, 4, 4), dtype=np.complex64)
    gamma[0, :2, 2:] = I2
    gamma[0, 2:, :2] = I2
    for i in range(3):
        gamma[i + 1, :2, 2:] = sigma[i]
        gamma[i + 1, 2:, :2] = -sigma[i]
    return gamma.sum(axis=0)                                 # [4, 4] complex64


def init_raw_params(key):
    """Raw SimpleKANLayer parameters (coeffs, scale, shift) per layer, + gamma."""
    raw = []
    for i in range(len(_KAN_LAYERS) - 1):
        din, dout = _KAN_LAYERS[i], _KAN_LAYERS[i + 1]
        key, sub = jax.random.split(key)
        coeffs = 0.1 * jax.random.normal(sub, (din, dout, _GRID_SIZE), jnp.float32)
        scale = jnp.ones((din, dout), jnp.float32)
        shift = jnp.zeros((din, dout), jnp.float32)
        raw.append((coeffs, scale, shift))
    # theta_log = log(1e-70): 1e-70 underflows to 0 in float32 (same as torch default)
    theta_log = jnp.log(jnp.float32(1e-70))
    g_sum = _make_gamma_sum()
    grT = jnp.asarray(np.ascontiguousarray(g_sum.real.T), jnp.float32)   # [beta, alpha]
    giT = jnp.asarray(np.ascontiguousarray(g_sum.imag.T), jnp.float32)
    return raw, theta_log, grT, giT


def pack_params(raw_params, grT, giT):
    """Host-side packing: per layer a [dout', 5*din_pad] weight and [dout', 1] bias.

    W[g*din_pad + i, j] = scale[i,j] * coeffs[i,j,g] * exp(-5 * grid[g]^2)
    (rows i >= din are zero padding so in-kernel sublane concats stay 8-aligned).
    The last layer additionally has the gamma contraction folded in: columns are
    [W @ grT | W @ giT] -> dout' = 8.
    """
    gconst = np.exp(-5.0 * np.asarray(_GRID_VALS, np.float32) ** 2).astype(np.float32)
    packed = []
    n = len(raw_params)
    for li, (coeffs, scale, shift) in enumerate(raw_params):
        din, dout, G = coeffs.shape
        din_pad = ((din + 7) // 8) * 8
        w = jnp.transpose(coeffs * scale[:, :, None], (2, 0, 1))     # [G, din, dout]
        w = w * jnp.asarray(gconst)[:, None, None]                   # fold exp(-5 g^2)
        if din_pad != din:
            w = jnp.pad(w, ((0, 0), (0, din_pad - din), (0, 0)))
        w = w.reshape(G * din_pad, dout)                             # row = g*din_pad + i
        b = jnp.sum(shift, axis=0, keepdims=True)                    # [1, dout]
        if li == n - 1:
            w = jnp.concatenate([w @ grT, w @ giT], axis=1)          # [G*din_pad, 8]
            b = jnp.concatenate([b @ grT, b @ giT], axis=1)          # [1, 8]
        packed += [jnp.asarray(w.T), jnp.asarray(b.T)]               # [dout', K], [dout', 1]
    return packed


# ---------------------------------------------------------------------------- wrapper

def nkat_dirac_kan_forward(x, packed, theta_log, noise_key, *, block_b=512):
    B = x.shape[0]
    n_blocks = max(1, (B + block_b - 1) // block_b)
    B_pad = n_blocks * block_b

    # batch on lanes; coord dim zero-padded 4 -> 8 (matching zero-padded weight rows)
    xT = jnp.zeros((8, B_pad), jnp.float32).at[:4, :B].set(x.T)

    x_spec = pl.BlockSpec((8, block_b), lambda i: (0, i))
    weight_specs = [pl.BlockSpec(p.shape, lambda i: (0, 0)) for p in packed]
    out_spec = pl.BlockSpec((8, block_b), lambda i: (0, i))

    outT = pl.pallas_call(
        _nkat_kernel,
        out_shape=jax.ShapeDtypeStruct((8, B_pad), jnp.float32),
        grid=(n_blocks,),
        in_specs=[x_spec] + weight_specs,
        out_specs=out_spec,
        compiler_params=pltpu.CompilerParams(
            dimension_semantics=("parallel",),          # megacore / v7x 2nd TC
            vmem_limit_bytes=32 * 1024 * 1024),
    )(xT, *packed)

    out = outT[:, :B].T                                              # [B, 8]
    dirac_field = (out[:, :4] + 1j * out[:, 4:]).astype(jnp.complex64)

    # theta correction (glue outside the kernel): theta = exp(theta_log) == 0.0 in f32,
    # kept for semantic fidelity with the PyTorch forward.
    theta = jnp.exp(theta_log)
    kr, ki = jax.random.split(noise_key)
    inv_sqrt2 = 1.0 / np.sqrt(2.0)
    noise = (jax.random.normal(kr, (B, 4), jnp.float32) * inv_sqrt2
             + 1j * jax.random.normal(ki, (B, 4), jnp.float32) * inv_sqrt2
             ).astype(jnp.complex64)
    return dirac_field + theta * noise * 1e-4, theta


# -------------------------------------------------------------------------- reference

def _reference_forward(x, raw_params, grT, giT):
    """Pure-JAX reference implementing the PyTorch SimpleKANLayer math directly."""
    grid = jnp.array(_GRID_VALS, jnp.float32)
    h = x
    for li, (coeffs, scale, shift) in enumerate(raw_params):
        xn = jnp.tanh(h)
        basis = jnp.exp(-5.0 * (xn[:, :, None] - grid[None, None, :]) ** 2)   # [B,din,G]
        h = jnp.einsum('big,ijg->bj', basis, coeffs * scale[:, :, None]) \
            + jnp.sum(shift, axis=0)
        if li < len(raw_params) - 1:
            h = jnp.tanh(h)
    return h @ grT, h @ giT


if __name__ == "__main__":
    key = jax.random.PRNGKey(0)
    key, kparam = jax.random.split(key)
    raw_params, theta_log, grT, giT = init_raw_params(kparam)
    packed = pack_params(raw_params, grT, giT)

    B = 1024                      # 2 batch blocks of 512 -> even block count for v7x
    key, kx, knoise = jax.random.split(key, 3)
    x = jax.random.normal(kx, (B, 4), jnp.float32)

    dirac_field, theta = nkat_dirac_kan_forward(x, packed, theta_log, knoise, block_b=512)
    dirac_field = jax.block_until_ready(dirac_field)
    theta = jax.block_until_ready(theta)

    # correctness check against the pure-JAX reference (raw, un-packed parameters)
    ref_re, ref_im = _reference_forward(x, raw_params, grT, giT)
    assert dirac_field.shape == (B, 4) and dirac_field.dtype == jnp.complex64
    np.testing.assert_allclose(np.real(dirac_field), np.asarray(ref_re), rtol=1e-4, atol=1e-5)
    np.testing.assert_allclose(np.imag(dirac_field), np.asarray(ref_im), rtol=1e-4, atol=1e-5)

    print("KERNEL_OK")
</pallas_src>

<mosaic_0001>
module attributes {stable_mosaic.version = 11 : i64} {
  func.func @_nkat_kernel(%arg0: i32, %arg1: memref<8x512xf32, #tpu.memory_space<vmem>>, %arg2: memref<64x40xf32, #tpu.memory_space<vmem>>, %arg3: memref<64x1xf32, #tpu.memory_space<vmem>>, %arg4: memref<32x320xf32, #tpu.memory_space<vmem>>, %arg5: memref<32x1xf32, #tpu.memory_space<vmem>>, %arg6: memref<16x160xf32, #tpu.memory_space<vmem>>, %arg7: memref<16x1xf32, #tpu.memory_space<vmem>>, %arg8: memref<8x80xf32, #tpu.memory_space<vmem>>, %arg9: memref<8x1xf32, #tpu.memory_space<vmem>>, %arg10: memref<8x512xf32, #tpu.memory_space<vmem>>) attributes {dimension_semantics = [#tpu.dimension_semantics<parallel>], iteration_bounds = array<i64: 2>, scalar_prefetch = 0 : i64, scratch_operands = 0 : i64, tpu.core_type = #tpu.core_type<tc>, window_params = [{transform_indices = @transform_0, window_bounds = array<i64: 8, 512>}, {pipeline_mode = #tpu.pipeline_mode<synchronous>, transform_indices = @transform_1, window_bounds = array<i64: 64, 40>}, {pipeline_mode = #tpu.pipeline_mode<synchronous>, transform_indices = @transform_2, window_bounds = array<i64: 64, 1>}, {pipeline_mode = #tpu.pipeline_mode<synchronous>, transform_indices = @transform_3, window_bounds = array<i64: 32, 320>}, {pipeline_mode = #tpu.pipeline_mode<synchronous>, transform_indices = @transform_4, window_bounds = array<i64: 32, 1>}, {pipeline_mode = #tpu.pipeline_mode<synchronous>, transform_indices = @transform_5, window_bounds = array<i64: 16, 160>}, {pipeline_mode = #tpu.pipeline_mode<synchronous>, transform_indices = @transform_6, window_bounds = array<i64: 16, 1>}, {pipeline_mode = #tpu.pipeline_mode<synchronous>, transform_indices = @transform_7, window_bounds = array<i64: 8, 80>}, {pipeline_mode = #tpu.pipeline_mode<synchronous>, transform_indices = @transform_8, window_bounds = array<i64: 8, 1>}, {transform_indices = @transform_9, window_bounds = array<i64: 8, 512>}]} {
    %c0 = arith.constant 0 : index
    %c0_0 = arith.constant 0 : index
    %0 = vector.load %arg1[%c0, %c0_0] : memref<8x512xf32, #tpu.memory_space<vmem>>, vector<8x512xf32>
    %1 = math.tanh %0 : vector<8x512xf32>
    %cst = arith.constant -5.000000e+00 : f32
    %2 = vector.broadcast %cst : f32 to vector<8x512xf32>
    %3 = arith.mulf %2, %1 : vector<8x512xf32>
    %4 = arith.mulf %3, %1 : vector<8x512xf32>
    %5 = math.exp %4 : vector<8x512xf32>
    %cst_1 = arith.constant 5.000000e+00 : f32
    %6 = vector.broadcast %cst_1 : f32 to vector<8x512xf32>
    %7 = arith.mulf %6, %1 : vector<8x512xf32>
    %8 = math.exp %7 : vector<8x512xf32>
    %cst_2 = arith.constant -5.000000e+00 : f32
    %9 = vector.broadcast %cst_2 : f32 to vector<8x512xf32>
    %10 = arith.mulf %9, %1 : vector<8x512xf32>
    %11 = math.exp %10 : vector<8x512xf32>
    %12 = arith.mulf %11, %11 : vector<8x512xf32>
    %13 = arith.mulf %5, %12 : vector<8x512xf32>
    %14 = arith.mulf %5, %11 : vector<8x512xf32>
    %15 = arith.mulf %5, %8 : vector<8x512xf32>
    %16 = arith.mulf %8, %8 : vector<8x512xf32>
    %17 = arith.mulf %5, %16 : vector<8x512xf32>
    %18 = tpu.concatenate %13, %14, %5, %15, %17 in 0 : vector<8x512xf32>, vector<8x512xf32>, vector<8x512xf32>, vector<8x512xf32>, vector<8x512xf32> -> vector<40x512xf32>
    %c0_3 = arith.constant 0 : index
    %c0_4 = arith.constant 0 : index
    %19 = vector.load %arg2[%c0_3, %c0_4] : memref<64x40xf32, #tpu.memory_space<vmem>>, vector<64x40xf32>
    %cst_5 = arith.constant dense<0.000000e+00> : vector<64x512xf32>
    %20 = tpu.matmul %19, %18, %cst_5 {dimension_numbers = #tpu.dot_dimension_numbers<[1], [0], [0], [1], [0, 0, 1, 1], [], []>} : vector<64x40xf32>, vector<40x512xf32>, vector<64x512xf32> -> vector<64x512xf32>
    %c0_6 = arith.constant 0 : index
    %c0_7 = arith.constant 0 : index
    %21 = vector.load %arg3[%c0_6, %c0_7] : memref<64x1xf32, #tpu.memory_space<vmem>>, vector<64x1xf32>
    %22 = vector.broadcast %21 : vector<64x1xf32> to vector<64x512xf32>
    %23 = arith.addf %20, %22 : vector<64x512xf32>
    %24 = math.tanh %23 : vector<64x512xf32>
    %25 = math.tanh %24 : vector<64x512xf32>
    %cst_8 = arith.constant -5.000000e+00 : f32
    %26 = vector.broadcast %cst_8 : f32 to vector<64x512xf32>
    %27 = arith.mulf %26, %25 : vector<64x512xf32>
    %28 = arith.mulf %27, %25 : vector<64x512xf32>
    %29 = math.exp %28 : vector<64x512xf32>
    %cst_9 = arith.constant 5.000000e+00 : f32
    %30 = vector.broadcast %cst_9 : f32 to vector<64x512xf32>
    %31 = arith.mulf %30, %25 : vector<64x512xf32>
    %32 = math.exp %31 : vector<64x512xf32>
    %cst_10 = arith.constant -5.000000e+00 : f32
    %33 = vector.broadcast %cst_10 : f32 to vector<64x512xf32>
    %34 = arith.mulf %33, %25 : vector<64x512xf32>
    %35 = math.exp %34 : vector<64x512xf32>
    %36 = arith.mulf %35, %35 : vector<64x512xf32>
    %37 = arith.mulf %29, %36 : vector<64x512xf32>
    %38 = arith.mulf %29, %35 : vector<64x512xf32>
    %39 = arith.mulf %29, %32 : vector<64x512xf32>
    %40 = arith.mulf %32, %32 : vector<64x512xf32>
    %41 = arith.mulf %29, %40 : vector<64x512xf32>
    %42 = tpu.concatenate %37, %38, %29, %39, %41 in 0 : vector<64x512xf32>, vector<64x512xf32>, vector<64x512xf32>, vector<64x512xf32>, vector<64x512xf32> -> vector<320x512xf32>
    %c0_11 = arith.constant 0 : index
    %c0_12 = arith.constant 0 : index
    %43 = vector.load %arg4[%c0_11, %c0_12] : memref<32x320xf32, #tpu.memory_space<vmem>>, vector<32x320xf32>
    %cst_13 = arith.constant dense<0.000000e+00> : vector<32x512xf32>
    %44 = tpu.matmul %43, %42, %cst_13 {dimension_numbers = #tpu.dot_dimension_numbers<[1], [0], [0], [1], [0, 0, 1, 1], [], []>} : vector<32x320xf32>, vector<320x512xf32>, vector<32x512xf32> -> vector<32x512xf32>
    %c0_14 = arith.constant 0 : index
    %c0_15 = arith.constant 0 : index
    %45 = vector.load %arg5[%c0_14, %c0_15] : memref<32x1xf32, #tpu.memory_space<vmem>>, vector<32x1xf32>
    %46 = vector.broadcast %45 : vector<32x1xf32> to vector<32x512xf32>
    %47 = arith.addf %44, %46 : vector<32x512xf32>
    %48 = math.tanh %47 : vector<32x512xf32>
    %49 = math.tanh %48 : vector<32x512xf32>
    %cst_16 = arith.constant -5.000000e+00 : f32
    %50 = vector.broadcast %cst_16 : f32 to vector<32x512xf32>
    %51 = arith.mulf %50, %49 : vector<32x512xf32>
    %52 = arith.mulf %51, %49 : vector<32x512xf32>
    %53 = math.exp %52 : vector<32x512xf32>
    %cst_17 = arith.constant 5.000000e+00 : f32
    %54 = vector.broadcast %cst_17 : f32 to vector<32x512xf32>
    %55 = arith.mulf %54, %49 : vector<32x512xf32>
    %56 = math.exp %55 : vector<32x512xf32>
    %cst_18 = arith.constant -5.000000e+00 : f32
    %57 = vector.broadcast %cst_18 : f32 to vector<32x512xf32>
    %58 = arith.mulf %57, %49 : vector<32x512xf32>
    %59 = math.exp %58 : vector<32x512xf32>
    %60 = arith.mulf %59, %59 : vector<32x512xf32>
    %61 = arith.mulf %53, %60 : vector<32x512xf32>
    %62 = arith.mulf %53, %59 : vector<32x512xf32>
    %63 = arith.mulf %53, %56 : vector<32x512xf32>
    %64 = arith.mulf %56, %56 : vector<32x512xf32>
    %65 = arith.mulf %53, %64 : vector<32x512xf32>
    %66 = tpu.concatenate %61, %62, %53, %63, %65 in 0 : vector<32x512xf32>, vector<32x512xf32>, vector<32x512xf32>, vector<32x512xf32>, vector<32x512xf32> -> vector<160x512xf32>
    %c0_19 = arith.constant 0 : index
    %c0_20 = arith.constant 0 : index
    %67 = vector.load %arg6[%c0_19, %c0_20] : memref<16x160xf32, #tpu.memory_space<vmem>>, vector<16x160xf32>
    %cst_21 = arith.constant dense<0.000000e+00> : vector<16x512xf32>
    %68 = tpu.matmul %67, %66, %cst_21 {dimension_numbers = #tpu.dot_dimension_numbers<[1], [0], [0], [1], [0, 0, 1, 1], [], []>} : vector<16x160xf32>, vector<160x512xf32>, vector<16x512xf32> -> vector<16x512xf32>
    %c0_22 = arith.constant 0 : index
    %c0_23 = arith.constant 0 : index
    %69 = vector.load %arg7[%c0_22, %c0_23] : memref<16x1xf32, #tpu.memory_space<vmem>>, vector<16x1xf32>
    %70 = vector.broadcast %69 : vector<16x1xf32> to vector<16x512xf32>
    %71 = arith.addf %68, %70 : vector<16x512xf32>
    %72 = math.tanh %71 : vector<16x512xf32>
    %73 = math.tanh %72 : vector<16x512xf32>
    %cst_24 = arith.constant -5.000000e+00 : f32
    %74 = vector.broadcast %cst_24 : f32 to vector<16x512xf32>
    %75 = arith.mulf %74, %73 : vector<16x512xf32>
    %76 = arith.mulf %75, %73 : vector<16x512xf32>
    %77 = math.exp %76 : vector<16x512xf32>
    %cst_25 = arith.constant 5.000000e+00 : f32
    %78 = vector.broadcast %cst_25 : f32 to vector<16x512xf32>
    %79 = arith.mulf %78, %73 : vector<16x512xf32>
    %80 = math.exp %79 : vector<16x512xf32>
    %cst_26 = arith.constant -5.000000e+00 : f32
    %81 = vector.broadcast %cst_26 : f32 to vector<16x512xf32>
    %82 = arith.mulf %81, %73 : vector<16x512xf32>
    %83 = math.exp %82 : vector<16x512xf32>
    %84 = arith.mulf %83, %83 : vector<16x512xf32>
    %85 = arith.mulf %77, %84 : vector<16x512xf32>
    %86 = arith.mulf %77, %83 : vector<16x512xf32>
    %87 = arith.mulf %77, %80 : vector<16x512xf32>
    %88 = arith.mulf %80, %80 : vector<16x512xf32>
    %89 = arith.mulf %77, %88 : vector<16x512xf32>
    %90 = tpu.concatenate %85, %86, %77, %87, %89 in 0 : vector<16x512xf32>, vector<16x512xf32>, vector<16x512xf32>, vector<16x512xf32>, vector<16x512xf32> -> vector<80x512xf32>
    %c0_27 = arith.constant 0 : index
    %c0_28 = arith.constant 0 : index
    %91 = vector.load %arg8[%c0_27, %c0_28] : memref<8x80xf32, #tpu.memory_space<vmem>>, vector<8x80xf32>
    %cst_29 = arith.constant dense<0.000000e+00> : vector<8x512xf32>
    %92 = tpu.matmul %91, %90, %cst_29 {dimension_numbers = #tpu.dot_dimension_numbers<[1], [0], [0], [1], [0, 0, 1, 1], [], []>} : vector<8x80xf32>, vector<80x512xf32>, vector<8x512xf32> -> vector<8x512xf32>
    %c0_30 = arith.constant 0 : index
    %c0_31 = arith.constant 0 : index
    %93 = vector.load %arg9[%c0_30, %c0_31] : memref<8x1xf32, #tpu.memory_space<vmem>>, vector<8x1xf32>
    %94 = vector.broadcast %93 : vector<8x1xf32> to vector<8x512xf32>
    %95 = arith.addf %92, %94 : vector<8x512xf32>
    %c0_32 = arith.constant 0 : index
    %c0_33 = arith.constant 0 : index
    %96 = vector.load %arg10[%c0_32, %c0_33] : memref<8x512xf32, #tpu.memory_space<vmem>>, vector<8x512xf32>
    tpu.vector_store %arg10[%c0_32, %c0_33], %95 {strides = array<i32>} : memref<8x512xf32, #tpu.memory_space<vmem>>, vector<8x512xf32>,
    return
  }
  func.func @transform_0(%arg0: i32) -> (i32, i32) {
    %c0_i32 = arith.constant 0 : i32
    %c0_i32_0 = arith.constant 0 : i32
    return %c0_i32, %arg0 : i32, i32
  }
  func.func @transform_1(%arg0: i32) -> (i32, i32) {
    %c0_i32 = arith.constant 0 : i32
    %c0_i32_0 = arith.constant 0 : i32
    %c0_i32_1 = arith.constant 0 : i32
    return %c0_i32, %c0_i32_0 : i32, i32
  }
  func.func @transform_2(%arg0: i32) -> (i32, i32) {
    %c0_i32 = arith.constant 0 : i32
    %c0_i32_0 = arith.constant 0 : i32
    %c0_i32_1 = arith.constant 0 : i32
    return %c0_i32, %c0_i32_0 : i32, i32
  }
  func.func @transform_3(%arg0: i32) -> (i32, i32) {
    %c0_i32 = arith.constant 0 : i32
    %c0_i32_0 = arith.constant 0 : i32
    %c0_i32_1 = arith.constant 0 : i32
    return %c0_i32, %c0_i32_0 : i32, i32
  }
  func.func @transform_4(%arg0: i32) -> (i32, i32) {
    %c0_i32 = arith.constant 0 : i32
    %c0_i32_0 = arith.constant 0 : i32
    %c0_i32_1 = arith.constant 0 : i32
    return %c0_i32, %c0_i32_0 : i32, i32
  }
  func.func @transform_5(%arg0: i32) -> (i32, i32) {
    %c0_i32 = arith.constant 0 : i32
    %c0_i32_0 = arith.constant 0 : i32
    %c0_i32_1 = arith.constant 0 : i32
    return %c0_i32, %c0_i32_0 : i32, i32
  }
  func.func @transform_6(%arg0: i32) -> (i32, i32) {
    %c0_i32 = arith.constant 0 : i32
    %c0_i32_0 = arith.constant 0 : i32
    %c0_i32_1 = arith.constant 0 : i32
    return %c0_i32, %c0_i32_0 : i32, i32
  }
  func.func @transform_7(%arg0: i32) -> (i32, i32) {
    %c0_i32 = arith.constant 0 : i32
    %c0_i32_0 = arith.constant 0 : i32
    %c0_i32_1 = arith.constant 0 : i32
    return %c0_i32, %c0_i32_0 : i32, i32
  }
  func.func @transform_8(%arg0: i32) -> (i32, i32) {
    %c0_i32 = arith.constant 0 : i32
    %c0_i32_0 = arith.constant 0 : i32
    %c0_i32_1 = arith.constant 0 : i32
    return %c0_i32, %c0_i32_0 : i32, i32
  }
  func.func @transform_9(%arg0: i32) -> (i32, i32) {
    %c0_i32 = arith.constant 0 : i32
    %c0_i32_0 = arith.constant 0 : i32
    return %c0_i32, %arg0 : i32, i32
  }
}

</mosaic_0001>

<llo_original>
// kernel: tpu_custom_call.1
$region0: #{tpu_custom_call.1}
  #allocation0 [shape = 'u32[]', space=smem, size = 0x4, offset = 0x4, fixed_abs, tag = 'smem constant byte address 0x4 - core index']
  #allocation1 [shape = 'u32[144,128]{1,0:T(1,128)}', space=vmem, size = 0x12000, scoped, tag = 'internal scratch']
  %s0 = inlined_call_operand.vmem [shape: f32[8,1024], index: 0, kind: input, shape index: {}]
  %s1 = inlined_call_operand.vmem [shape: f32[64,40], index: 1, kind: input, shape index: {}]
  %s2 = inlined_call_operand.vmem [shape: f32[64,1], index: 2, kind: input, shape index: {}]
  %s3 = inlined_call_operand.vmem [shape: f32[32,320], index: 3, kind: input, shape index: {}]
  %s4 = inlined_call_operand.vmem [shape: f32[32,1], index: 4, kind: input, shape index: {}]
  %s5 = inlined_call_operand.hbm [shape: f32[16,160], index: 5, kind: input, shape index: {}]
  %s6 = inlined_call_operand.vmem [shape: f32[16,1], index: 6, kind: input, shape index: {}]
  %s7 = inlined_call_operand.vmem [shape: f32[8,80], index: 7, kind: input, shape index: {}]
  %s8 = inlined_call_operand.vmem [shape: f32[8,1], index: 8, kind: input, shape index: {}]
  %s9 = inlined_call_operand.hbm [shape: f32[8,1024], index: 9, kind: output, shape index: {}]
  %s10 = sld [smem:[#allocation0]]
  $region73: #{tpu_custom_call.1} parent=0
    _
  %s12 = ssub.s32 1, %s10
  %s13 = scalar_select 0, %s12, %s10
  $region1: #{tpu_custom_call.1} parent=0
    #allocation2 [shape = 'u8[16384]{0}', space=vmem, size = 0x4000, scoped, tag = 'input window, operand 5, single buffered']
    #allocation3 [shape = 's32[2]{0}', space=sflag, size = 0x8, scoped, tag = 'scoped memory for tpu_custom_call.1']
    #allocation4 [shape = 's32[2]{0}', space=sflag, size = 0x8, scoped, tag = 'scoped memory for tpu_custom_call.1']
    #allocation5 [shape = 'u8[32768]{0}', space=vmem, size = 0x8000, scoped, tag = 'output window, operand 0']
    %14 = vsyncpa [#allocation3], 0
    %15 = vsyncpa [#allocation4], 0
    %s16 = scalar_lea.sflag [#allocation4], 1
    %17 = vsyncpa %s16, 0
    loop: start=0, step=1, limit=4
    $region2: #{tpu_custom_call.1} parent=1 // loop_pre_header
      _
    $region3: #{tpu_custom_call.1} parent=1 // loop_header
      %s19 = sphi 0, %s23
      %p20 = scmp.ge.s32.totalorder %s19, 4
      %s29 = sphi 0, %s31
      %s32 = sphi 0, %s29
      %s33 = sphi 0, %s32
      %s49 = sphi 0, %s33
      %s53 = sphi 0, %s53
      %s55 = sphi 0, %s53
      %s56 = sphi 0, %s55
      %s70 = sphi 0, %s56
      %s74 = sphi 0, %s74
      %s76 = sphi 0, %s74
      %s77 = sphi 0, %s76
      %s91 = sphi 0, %s77
      %s95 = sphi 0, %s95
      %s97 = sphi 0, %s95
      %s98 = sphi 0, %s97
      %s112 = sphi 0, %s98
      %s116 = sphi 0, %s116
      %s118 = sphi 0, %s116
      %s119 = sphi 0, %s118
      %s133 = sphi 0, %s119
      %s137 = sphi 0, %s137
      %s139 = sphi 0, %s137
      %s140 = sphi 0, %s139
      %s154 = sphi 0, %s140
      %s158 = sphi 0, %s158
      %s160 = sphi 0, %s158
      %s161 = sphi 0, %s160
      %s175 = sphi 0, %s161
      %s179 = sphi 0, %s179
      %s181 = sphi 0, %s179
      %s182 = sphi 0, %s181
      %s196 = sphi 0, %s182
      %s200 = sphi 0, %s200
      %s202 = sphi 0, %s200
      %s203 = sphi 0, %s202
      %s217 = sphi 0, %s203
      %s223 = sphi 0, %s225
      %s226 = sphi 0, %s223
      %s227 = sphi 0, %s226
      %s243 = sphi 0, %s227
    $region4: #{tpu_custom_call.1} parent=1 // loop_header_branch
      %22 = sbr.rel (%p20) target = $region8
    $region5: #{tpu_custom_call.1} parent=1 // loop_body
      %s24 = ssub.s32 %s19, 1
      %s25 = ssub.s32 %s19, 2
      %s26 = sadd.s32 %s19, 1
      %s27 = ssub.s32 %s19, %s26
      %p28 = scmp.eq.s32.totalorder %s27, 0
      %s30 = sadd.s32 %s29, 1
      %s31 = scalar_select %p28, %s29, %s30
      %p34 = pneg %p28
      %p35 = scmp.eq.s32.totalorder %s19, 1
      %p36 = por %p34, %p35
      %p37 = scmp.ne.s32.totalorder %s29, %s32
      %p38 = scmp.eq.s32.totalorder %s19, 0
      %p39 = por %p37, %p38
      %p40 = scmp.ne.s32.totalorder %s29, %s32
      %p41 = scmp.eq.s32.totalorder %s24, 1
      %p42 = por %p40, %p41
      %p43 = scmp.ne.s32.totalorder %s32, %s33
      %p44 = scmp.eq.s32.totalorder %s24, 0
      %p45 = por %p43, %p44
      %p46 = scmp.ne.s32.totalorder %s32, %s33
      %p47 = scmp.eq.s32.totalorder %s25, 1
      %p48 = por %p46, %p47
      %p50 = scmp.ne.s32.totalorder %s33, %s49
      %p51 = scmp.eq.s32.totalorder %s25, 0
      %p52 = por %p50, %p51
      %s54 = sadd.s32 %s53, 1
      %p57 = scmp.eq.s32.totalorder %s19, 1
      %p58 = scmp.ne.s32.totalorder %s53, %s55
      %p59 = scmp.eq.s32.totalorder %s19, 0
      %p60 = por %p58, %p59
      %p61 = scmp.ne.s32.totalorder %s53, %s55
      %p62 = scmp.eq.s32.totalorder %s24, 1
      %p63 = por %p61, %p62
      %p64 = scmp.ne.s32.totalorder %s55, %s56
      %p65 = scmp.eq.s32.totalorder %s24, 0
      %p66 = por %p64, %p65
      %p67 = scmp.ne.s32.totalorder %s55, %s56
      %p68 = scmp.eq.s32.totalorder %s25, 1
      %p69 = por %p67, %p68
      %p71 = scmp.ne.s32.totalorder %s56, %s70
      %p72 = scmp.eq.s32.totalorder %s25, 0
      %p73 = por %p71, %p72
      %s75 = sadd.s32 %s74, 1
      %p78 = scmp.eq.s32.totalorder %s19, 1
      %p79 = scmp.ne.s32.totalorder %s74, %s76
      %p80 = scmp.eq.s32.totalorder %s19, 0
      %p81 = por %p79, %p80
      %p82 = scmp.ne.s32.totalorder %s74, %s76
      %p83 = scmp.eq.s32.totalorder %s24, 1
      %p84 = por %p82, %p83
      %p85 = scmp.ne.s32.totalorder %s76, %s77
      %p86 = scmp.eq.s32.totalorder %s24, 0
      %p87 = por %p85, %p86
      %p88 = scmp.ne.s32.totalorder %s76, %s77
      %p89 = scmp.eq.s32.totalorder %s25, 1
      %p90 = por %p88, %p89
      %p92 = scmp.ne.s32.totalorder %s77, %s91
      %p93 = scmp.eq.s32.totalorder %s25, 0
      %p94 = por %p92, %p93
      %s96 = sadd.s32 %s95, 1
      %p99 = scmp.eq.s32.totalorder %s19, 1
      %p100 = scmp.ne.s32.totalorder %s95, %s97
      %p101 = scmp.eq.s32.totalorder %s19, 0
      %p102 = por %p100, %p101
      %p103 = scmp.ne.s32.totalorder %s95, %s97
      %p104 = scmp.eq.s32.totalorder %s24, 1
      %p105 = por %p103, %p104
      %p106 = scmp.ne.s32.totalorder %s97, %s98
      %p107 = scmp.eq.s32.totalorder %s24, 0
      %p108 = por %p106, %p107
      %p109 = scmp.ne.s32.totalorder %s97, %s98
      %p110 = scmp.eq.s32.totalorder %s25, 1
      %p111 = por %p109, %p110
      %p113 = scmp.ne.s32.totalorder %s98, %s112
      %p114 = scmp.eq.s32.totalorder %s25, 0
      %p115 = por %p113, %p114
      %s117 = sadd.s32 %s116, 1
      %p120 = scmp.eq.s32.totalorder %s19, 1
      %p121 = scmp.ne.s32.totalorder %s116, %s118
      %p122 = scmp.eq.s32.totalorder %s19, 0
      %p123 = por %p121, %p122
      %p124 = scmp.ne.s32.totalorder %s116, %s118
      %p125 = scmp.eq.s32.totalorder %s24, 1
      %p126 = por %p124, %p125
      %p127 = scmp.ne.s32.totalorder %s118, %s119
      %p128 = scmp.eq.s32.totalorder %s24, 0
      %p129 = por %p127, %p128
      %p130 = scmp.ne.s32.totalorder %s118, %s119
      %p131 = scmp.eq.s32.totalorder %s25, 1
      %p132 = por %p130, %p131
      %p134 = scmp.ne.s32.totalorder %s119, %s133
      %p135 = scmp.eq.s32.totalorder %s25, 0
      %p136 = por %p134, %p135
      %s138 = sadd.s32 %s137, 1
      %p141 = scmp.eq.s32.totalorder %s19, 1
      %p142 = scmp.ne.s32.totalorder %s137, %s139
      %p143 = scmp.eq.s32.totalorder %s19, 0
      %p144 = por %p142, %p143
      %p145 = scmp.ne.s32.totalorder %s137, %s139
      %p146 = scmp.eq.s32.totalorder %s24, 1
      %p147 = por %p145, %p146
      %p148 = scmp.ne.s32.totalorder %s139, %s140
      %p149 = scmp.eq.s32.totalorder %s24, 0
      %p150 = por %p148, %p149
      %p151 = scmp.ne.s32.totalorder %s139, %s140
      %p152 = scmp.eq.s32.totalorder %s25, 1
      %p153 = por %p151, %p152
      %p155 = scmp.ne.s32.totalorder %s140, %s154
      %p156 = scmp.eq.s32.totalorder %s25, 0
      %p157 = por %p155, %p156
      %s159 = sadd.s32 %s158, 1
      %p162 = scmp.eq.s32.totalorder %s19, 1
      %p163 = scmp.ne.s32.totalorder %s158, %s160
      %p164 = scmp.eq.s32.totalorder %s19, 0
      %p165 = por %p163, %p164
      %p166 = scmp.ne.s32.totalorder %s158, %s160
      %p167 = scmp.eq.s32.totalorder %s24, 1
      %p168 = por %p166, %p167
      %p169 = scmp.ne.s32.totalorder %s160, %s161
      %p170 = scmp.eq.s32.totalorder %s24, 0
      %p171 = por %p169, %p170
      %p172 = scmp.ne.s32.totalorder %s160, %s161
      %p173 = scmp.eq.s32.totalorder %s25, 1
      %p174 = por %p172, %p173
      %p176 = scmp.ne.s32.totalorder %s161, %s175
      %p177 = scmp.eq.s32.totalorder %s25, 0
      %p178 = por %p176, %p177
      %s180 = sadd.s32 %s179, 1
      %p183 = scmp.eq.s32.totalorder %s19, 1
      %p184 = scmp.ne.s32.totalorder %s179, %s181
      %p185 = scmp.eq.s32.totalorder %s19, 0
      %p186 = por %p184, %p185
      %p187 = scmp.ne.s32.totalorder %s179, %s181
      %p188 = scmp.eq.s32.totalorder %s24, 1
      %p189 = por %p187, %p188
      %p190 = scmp.ne.s32.totalorder %s181, %s182
      %p191 = scmp.eq.s32.totalorder %s24, 0
      %p192 = por %p190, %p191
      %p193 = scmp.ne.s32.totalorder %s181, %s182
      %p194 = scmp.eq.s32.totalorder %s25, 1
      %p195 = por %p193, %p194
      %p197 = scmp.ne.s32.totalorder %s182, %s196
      %p198 = scmp.eq.s32.totalorder %s25, 0
      %p199 = por %p197, %p198
      %s201 = sadd.s32 %s200, 1
      %p204 = scmp.eq.s32.totalorder %s19, 1
      %p205 = scmp.ne.s32.totalorder %s200, %s202
      %p206 = scmp.eq.s32.totalorder %s19, 0
      %p207 = por %p205, %p206
      %p208 = scmp.ne.s32.totalorder %s200, %s202
      %p209 = scmp.eq.s32.totalorder %s24, 1
      %p210 = por %p208, %p209
      %p211 = scmp.ne.s32.totalorder %s202, %s203
      %p212 = scmp.eq.s32.totalorder %s24, 0
      %p213 = por %p211, %p212
      %p214 = scmp.ne.s32.totalorder %s202, %s203
      %p215 = scmp.eq.s32.totalorder %s25, 1
      %p216 = por %p214, %p215
      %p218 = scmp.ne.s32.totalorder %s203, %s217
      %p219 = scmp.eq.s32.totalorder %s25, 0
      %p220 = por %p218, %p219
      %s221 = ssub.s32 %s19, %s26
      %p222 = scmp.eq.s32.totalorder %s221, 0
      %s224 = sadd.s32 %s223, 1
      %s225 = scalar_select %p222, %s223, %s224
      %p228 = pneg %p222
      %p229 = scmp.eq.s32.totalorder %s19, 1
      %p230 = por %p228, %p229
      %p231 = scmp.ne.s32.totalorder %s223, %s226
      %p232 = scmp.eq.s32.totalorder %s19, 0
      %p233 = por %p231, %p232
      %p234 = scmp.ne.s32.totalorder %s223, %s226
      %p235 = scmp.eq.s32.totalorder %s24, 1
      %p236 = por %p234, %p235
      %p237 = scmp.ne.s32.totalorder %s226, %s227
      %p238 = scmp.eq.s32.totalorder %s24, 0
      %p239 = por %p237, %p238
      %p240 = scmp.ne.s32.totalorder %s226, %s227
      %p241 = scmp.eq.s32.totalorder %s25, 1
      %p242 = por %p240, %p241
      %p244 = scmp.ne.s32.totalorder %s227, %s243
      %p245 = scmp.eq.s32.totalorder %s25, 0
      %p246 = por %p244, %p245
      %p247 = scmp.le.s32.totalorder 1, %s19
      %p248 = scmp.lt.s32.totalorder %s19, 3
      %p249 = pnand %p247, %p248
      %p250 = pneg %p249
      // Predicated region
      $region9: #{tpu_custom_call.1} parent=5 // pred_check
        _
      $region10: #{tpu_custom_call.1} parent=5 // pred_check_branch
        %252 = sbr.rel (%p249) target = $region12
      $region11: #{tpu_custom_call.1} parent=5 // pred_region
        %s253 = ssub.s32 %s19, 1
        // Predicated region
        $region13: #{tpu_custom_call.1} parent=11 // pred_check
          %p254 = pneg %p66
        $region14: #{tpu_custom_call.1} parent=11 // pred_check_branch
          %256 = sbr.rel (%p254) target = $region16
        $region15: #{tpu_custom_call.1} parent=11 // pred_region
          _
        $region16: #{tpu_custom_call.1} parent=11 // pred_fallthru
          _
        // Predicated region
        $region17: #{tpu_custom_call.1} parent=11 // pred_check
          %p257 = pneg %p87
        $region18: #{tpu_custom_call.1} parent=11 // pred_check_branch
          %259 = sbr.rel (%p257) target = $region20
        $region19: #{tpu_custom_call.1} parent=11 // pred_region
          _
        $region20: #{tpu_custom_call.1} parent=11 // pred_fallthru
          _
        // Predicated region
        $region21: #{tpu_custom_call.1} parent=11 // pred_check
          %p260 = pneg %p108
        $region22: #{tpu_custom_call.1} parent=11 // pred_check_branch
          %262 = sbr.rel (%p260) target = $region24
        $region23: #{tpu_custom_call.1} parent=11 // pred_region
          _
        $region24: #{tpu_custom_call.1} parent=11 // pred_fallthru
          _
        // Predicated region
        $region25: #{tpu_custom_call.1} parent=11 // pred_check
          %p263 = pneg %p129
        $region26: #{tpu_custom_call.1} parent=11 // pred_check_branch
          %265 = sbr.rel (%p263) target = $region28
        $region27: #{tpu_custom_call.1} parent=11 // pred_region
          _
        $region28: #{tpu_custom_call.1} parent=11 // pred_fallthru
          _
        // Predicated region
        $region29: #{tpu_custom_call.1} parent=11 // pred_check
          %p266 = pneg %p150
        $region30: #{tpu_custom_call.1} parent=11 // pred_check_branch
          %268 = sbr.rel (%p266) target = $region32
        $region31: #{tpu_custom_call.1} parent=11 // pred_region
          %s270 = ssub.s32 512, 512
          %271 = vsyncadd [#allocation3], %s270
          %s272 = sshll.u32 [#allocation2], 4
          %s273 = int_to_ptr.vmem [resolvable:$true] %s272
          %278 = dma.hbm_to_vmem [thread:$0]  %s5, 512, %s273, [#allocation3], 256, 256, 16
        $region32: #{tpu_custom_call.1} parent=11 // pred_fallthru
          _
        // Predicated region
        $region33: #{tpu_custom_call.1} parent=11 // pred_check
          %p279 = pneg %p171
        $region34: #{tpu_custom_call.1} parent=11 // pred_check_branch
          %281 = sbr.rel (%p279) target = $region36
        $region35: #{tpu_custom_call.1} parent=11 // pred_region
          _
        $region36: #{tpu_custom_call.1} parent=11 // pred_fallthru
          _
        // Predicated region
        $region37: #{tpu_custom_call.1} parent=11 // pred_check
          %p282 = pneg %p192
        $region38: #{tpu_custom_call.1} parent=11 // pred_check_branch
          %284 = sbr.rel (%p282) target = $region40
        $region39: #{tpu_custom_call.1} parent=11 // pred_region
          _
        $region40: #{tpu_custom_call.1} parent=11 // pred_fallthru
          _
        // Predicated region
        $region41: #{tpu_custom_call.1} parent=11 // pred_check
          %p285 = pneg %p213
        $region42: #{tpu_custom_call.1} parent=11 // pred_check_branch
          %287 = sbr.rel (%p285) target = $region44
        $region43: #{tpu_custom_call.1} parent=11 // pred_region
          _
        $region44: #{tpu_custom_call.1} parent=11 // pred_fallthru
          _
      $region12: #{tpu_custom_call.1} parent=5 // pred_fallthru
        _
      %p288 = scmp.lt.s32.totalorder %s19, 2
      // Predicated region
      $region45: #{tpu_custom_call.1} parent=5 // pred_check
        %p289 = pneg %p288
      $region46: #{tpu_custom_call.1} parent=5 // pred_check_branch
        %291 = sbr.rel (%p289) target = $region48
      $region47: #{tpu_custom_call.1} parent=5 // pred_region
        // Predicated region
        $region49: #{tpu_custom_call.1} parent=47 // pred_check
          %p292 = pneg %p39
        $region50: #{tpu_custom_call.1} parent=47 // pred_check_branch
          %294 = sbr.rel (%p292) target = $region52
        $region51: #{tpu_custom_call.1} parent=47 // pred_region
          %s295 = smul.u32 4, %s19
          %p296 = scmp.lt.s32.totalorder %s295, 7
          %s297 = scalar_select %p296, %s295, 7
          %s298 = smul.addr %s297, 8
          %s299 = scalar_lea.vmem %s0, %s298
          %s300 = smul.u32 4, %s19
        $region52: #{tpu_custom_call.1} parent=47 // pred_fallthru
          _
      $region48: #{tpu_custom_call.1} parent=5 // pred_fallthru
        _
      %p301 = scmp.le.s32.totalorder 1, %s19
      %p302 = scmp.lt.s32.totalorder %s19, 3
      %p303 = pnand %p301, %p302
      %p304 = pneg %p303
      // Predicated region
      $region53: #{tpu_custom_call.1} parent=5 // pred_check
        _
      $region54: #{tpu_custom_call.1} parent=5 // pred_check_branch
        %306 = sbr.rel (%p303) target = $region56
      $region55: #{tpu_custom_call.1} parent=5 // pred_region
        %s307 = ssub.s32 %s19, 1
        // Predicated region
        $region57: #{tpu_custom_call.1} parent=55 // pred_check
          %p308 = pneg %p150
        $region58: #{tpu_custom_call.1} parent=55 // pred_check_branch
          %310 = sbr.rel (%p308) target = $region60
        $region59: #{tpu_custom_call.1} parent=55 // pred_region
          %311 = dma.done [#allocation3], 512
        $region60: #{tpu_custom_call.1} parent=55 // pred_fallthru
          _
        %s312 = smul.u32 4, %s24
        %p313 = scmp.lt.s32.totalorder %s312, 7
        %s314 = scalar_select %p313, %s312, 7
        %s315 = smul.addr %s314, 8
        %s316 = scalar_lea.vmem %s0, %s315
        %p317 = pneg %p45
        %p318 = pneg %p42
        %p319 = pneg %p66
        %p320 = pneg %p63
        %p321 = pneg %p87
        %p322 = pneg %p84
        %p323 = pneg %p108
        %p324 = pneg %p105
        %p325 = pneg %p129
        %p326 = pneg %p126
        %p327 = pneg %p150
        %p328 = pneg %p147
        %p329 = pneg %p171
        %p330 = pneg %p168
        %p331 = pneg %p192
        %p332 = pneg %p189
        %p333 = pneg %p213
        %p334 = pneg %p210
        %p335 = pneg %p239
        %p336 = pneg %p236
        %s337 = sand.u32 %s226, 1
        %s338 = scalar_lea.sflag [#allocation4], %s337
        %s339 = sand.u32 %s226, 1
        %s340 = smul.addr %s339, 32
        %s341 = scalar_lea.vmem [#allocation5], %s340
        %s342 = smul.u32 4, %s24
        %p343 = scmp.lt.s32.totalorder %s342, 7
        %s344 = scalar_select %p343, %s342, 7
        %s345 = smul.addr %s344, 8
        %s346 = scalar_lea.vmem %s0, %s345
        %s347 = smul.u32 4, %s24
        %s348 = smul.u32 4, %s24
        %v349 = vld [vmem:[%s346] sm:$0xff]
        %v350 = vld [vmem:[%s346 + $0x8] sm:$0xff]
        %v351 = vld [vmem:[%s346 + $0x10] sm:$0xff]
        %v352 = vld [vmem:[%s346 + $0x18] sm:$0xff]
        %v353 = vtanh.pop %v349
        %v354 = vtanh.pop %v350
        %v355 = vtanh.pop %v351
        %v356 = vtanh.pop %v352
        %v357 = vmul.f32 %v353, -5.0
        %v358 = vmul.f32 %v354, -5.0
        %v359 = vmul.f32 %v355, -5.0
        %v360 = vmul.f32 %v356, -5.0
        %v361 = vmul.f32 %v357, %v353
        %v362 = vmul.f32 %v358, %v354
        %v363 = vmul.f32 %v359, %v355
        %v364 = vmul.f32 %v360, %v356
        %v365 = vmul.f32 %v361, 1.442695
        %v366 = vpow.pop %v365
        %v367 = vmul.f32 %v362, 1.442695
        %v368 = vpow.pop %v367
        %v369 = vmul.f32 %v363, 1.442695
        %v370 = vpow.pop %v369
        %v371 = vmul.f32 %v364, 1.442695
        %v372 = vpow.pop %v371
        %v373 = vmul.f32 %v353, 5.0
        %v374 = vmul.f32 %v354, 5.0
        %v375 = vmul.f32 %v355, 5.0
        %v376 = vmul.f32 %v356, 5.0
        %v377 = vmul.f32 %v373, 1.442695
        %v378 = vpow.pop %v377
        %v379 = vmul.f32 %v374, 1.442695
        %v380 = vpow.pop %v379
        %v381 = vmul.f32 %v375, 1.442695
        %v382 = vpow.pop %v381
        %v383 = vmul.f32 %v376, 1.442695
        %v384 = vpow.pop %v383
        %v385 = vmul.f32 %v357, 1.442695
        %v386 = vpow.pop %v385
        %v387 = vmul.f32 %v358, 1.442695
        %v388 = vpow.pop %v387
        %v389 = vmul.f32 %v359, 1.442695
        %v390 = vpow.pop %v389
        %v391 = vmul.f32 %v360, 1.442695
        %v392 = vpow.pop %v391
        %v393 = vmul.f32 %v386, %v386
        %v394 = vmul.f32 %v388, %v388
        %v395 = vmul.f32 %v390, %v390
        %v396 = vmul.f32 %v392, %v392
        %v397 = vmul.f32 %v366, %v393
        %v398 = vmul.f32 %v368, %v394
        %v399 = vmul.f32 %v370, %v395
        %v400 = vmul.f32 %v372, %v396
        %v401 = vmul.f32 %v366, %v386
        %v402 = vmul.f32 %v368, %v388
        %v403 = vmul.f32 %v370, %v390
        %v404 = vmul.f32 %v372, %v392
        %v405 = vmul.f32 %v366, %v378
        %v406 = vmul.f32 %v368, %v380
        %v407 = vmul.f32 %v370, %v382
        %v408 = vmul.f32 %v372, %v384
        %v409 = vmul.f32 %v378, %v378
        %v410 = vmul.f32 %v380, %v380
        %v411 = vmul.f32 %v382, %v382
        %v412 = vmul.f32 %v384, %v384
        %v413 = vmul.f32 %v366, %v409
        %v414 = vmul.f32 %v368, %v410
        %v415 = vmul.f32 %v370, %v411
        %v416 = vmul.f32 %v372, %v412
        %v417 = vld [vmem:[%s1] sm:$0xff]
        %v418 = vld [vmem:[%s1 + $0x8] sm:$0xff]
        %v419 = vld [vmem:[%s1 + $0x10] sm:$0xff]
        %v420 = vld [vmem:[%s1 + $0x18] sm:$0xff]
        %v421 = vld [vmem:[%s1 + $0x20] sm:$0xff]
        %v422 = vld [vmem:[%s1 + $0x28] sm:$0xff]
        %v423 = vld [vmem:[%s1 + $0x30] sm:$0xff]
        %v424 = vld [vmem:[%s1 + $0x38] sm:$0xff]
        %v425 = vld [vmem:[%s2] sm:$0xff]
        %v426 = vld [vmem:[%s2 + $0x8] sm:$0xff]
        %v427 = vld [vmem:[%s2 + $0x10] sm:$0xff]
        %v428 = vld [vmem:[%s2 + $0x18] sm:$0xff]
        %v429 = vld [vmem:[%s2 + $0x20] sm:$0xff]
        %v430 = vld [vmem:[%s2 + $0x28] sm:$0xff]
        %v431 = vld [vmem:[%s2 + $0x30] sm:$0xff]
        %v432 = vld [vmem:[%s2 + $0x38] sm:$0xff]
        %434 = vset.pattern.permute.xlu0 0
        %435 = vperm.xlu0 %434, %v425
        %v436 = vpop.permute.xlu0 %435
        %439 = vset.pattern.permute.xlu0 0
        %440 = vperm.xlu0 %439, %v426
        %v441 = vpop.permute.xlu0 %440
        %444 = vset.pattern.permute.xlu0 0
        %445 = vperm.xlu0 %444, %v427
        %v446 = vpop.permute.xlu0 %445
        %449 = vset.pattern.permute.xlu0 0
        %450 = vperm.xlu0 %449, %v428
        %v451 = vpop.permute.xlu0 %450
        %454 = vset.pattern.permute.xlu0 0
        %455 = vperm.xlu0 %454, %v429
        %v456 = vpop.permute.xlu0 %455
        %459 = vset.pattern.permute.xlu0 0
        %460 = vperm.xlu0 %459, %v430
        %v461 = vpop.permute.xlu0 %460
        %464 = vset.pattern.permute.xlu0 0
        %465 = vperm.xlu0 %464, %v431
        %v466 = vpop.permute.xlu0 %465
        %469 = vset.pattern.permute.xlu0 0
        %470 = vperm.xlu0 %469, %v432
        %v471 = vpop.permute.xlu0 %470
        %vm473 = vcmask 326656
        %v475 = vsel %vm473, %v417, 0
        %v478 = vsel %vm473, %v418, 0
        %v481 = vsel %vm473, %v419, 0
        %v484 = vsel %vm473, %v420, 0
        %v487 = vsel %vm473, %v421, 0
        %v490 = vsel %vm473, %v422, 0
        %v493 = vsel %vm473, %v423, 0
        %v496 = vsel %vm473, %v424, 0
        %498 = vmatprep.subr.mxu0 0.0
        %499 = vmatpush1.msra.mxu0 0.0
        %500 = vmatprep.subr.mxu0 0.0
        %501 = vmatpush1.msra.mxu0 0.0
        %502 = vmatprep.subr.mxu0 0.0
        %503 = vmatpush1.msra.mxu0 0.0
        %504 = vmatprep.subr.mxu0 0.0
        %505 = vmatpush1.msra.mxu0 0.0
        %506 = vmatprep.subr.mxu0 0.0
        %507 = vmatpush1.msra.mxu0 0.0
        %508 = vmatprep.subr.mxu0 0.0
        %509 = vmatpush1.msra.mxu0 0.0
        %510 = vmatprep.subr.mxu0 0.0
        %511 = vmatpush1.msra.mxu0 0.0
        %512 = vmatprep.subr.mxu0 0.0
        %513 = vmatpush1.msra.mxu0 0.0
        %514 = vmatprep.subr.mxu0 0.0
        %515 = vmatpush1.msra.mxu0 0.0
        %516 = vmatprep.subr.mxu0 0.0
        %517 = vmatpush1.msra.mxu0 0.0
        %518 = vmatprep.subr.mxu0 0.0
        %519 = vmatpush1.msra.mxu0 0.0
        %520 = vmatprep.subr.mxu0 %v414
        %521 = vmatpush1.msra.mxu0 %v413
        %522 = vmatprep.subr.mxu0 %v406
        %523 = vmatpush1.msra.mxu0 %v405
        %524 = vmatprep.subr.mxu0 %v368
        %525 = vmatpush1.msra.mxu0 %v366
        %526 = vmatprep.subr.mxu0 %v402
        %527 = vmatpush1.msra.mxu0 %v401
        %528 = vmatprep.subr.mxu0 %v398
        %529 = vmatpush1.msra.mxu0 %v397
        %530 = vmatprep.subr.mxu0 0.0
        %531 = vmatpush2.msra.mxu0 0.0
        %532 = vmatprep.subr.mxu0 0.0
        %533 = vmatpush2.msra.mxu0 0.0
        %534 = vmatprep.subr.mxu0 0.0
        %535 = vmatpush2.msra.mxu0 0.0
        %536 = vmatprep.subr.mxu0 0.0
        %537 = vmatpush2.msra.mxu0 0.0
        %538 = vmatprep.subr.mxu0 0.0
        %539 = vmatpush2.msra.mxu0 0.0
        %540 = vmatprep.subr.mxu0 0.0
        %541 = vmatpush2.msra.mxu0 0.0
        %542 = vmatprep.subr.mxu0 0.0
        %543 = vmatpush2.msra.mxu0 0.0
        %544 = vmatprep.subr.mxu0 0.0
        %545 = vmatpush2.msra.mxu0 0.0
        %546 = vmatprep.subr.mxu0 0.0
        %547 = vmatpush2.msra.mxu0 0.0
        %548 = vmatprep.subr.mxu0 0.0
        %549 = vmatpush2.msra.mxu0 0.0
        %550 = vmatprep.subr.mxu0 0.0
        %551 = vmatpush2.msra.mxu0 0.0
        %552 = vmatprep.subr.mxu0 0.0
        %553 = vmatpush2.msra.mxu0 0.0
        %554 = vmatprep.subr.mxu0 0.0
        %555 = vmatpush2.msra.mxu0 0.0
        %556 = vmatprep.subr.mxu0 0.0
        %557 = vmatpush2.msra.mxu0 0.0
        %558 = vmatprep.subr.mxu0 0.0
        %559 = vmatpush2.msra.mxu0 0.0
        %560 = vmatprep.subr.mxu0 0.0
        %561 = vmatpush2.msra.mxu0 0.0
        %562 = vmatprep.mubr.f32.mxu0 0.0
        %563 = vmatmul.mubr.f32.gmra.mxu0 %v475
        %v564 = vpop.f32.mrf.mxu0
        %v565 = vadd.f32 %v436, %v564
        %v566 = vpop.f32.mrf.mxu0
        %v567 = vadd.f32 %v436, %v566
        %568 = vmatprep.mubr.f32.mxu0 0.0
        %569 = vmatmul.mubr.f32.gmra.mxu0 %v478
        %v570 = vpop.f32.mrf.mxu0
        %v571 = vadd.f32 %v441, %v570
        %v572 = vpop.f32.mrf.mxu0
        %v573 = vadd.f32 %v441, %v572
        %574 = vmatprep.mubr.f32.mxu0 0.0
        %575 = vmatmul.mubr.f32.gmra.mxu0 %v481
        %v576 = vpop.f32.mrf.mxu0
        %v577 = vadd.f32 %v446, %v576
        %v578 = vpop.f32.mrf.mxu0
        %v579 = vadd.f32 %v446, %v578
        %580 = vmatprep.mubr.f32.mxu0 0.0
        %581 = vmatmul.mubr.f32.gmra.mxu0 %v484
        %v582 = vpop.f32.mrf.mxu0
        %v583 = vadd.f32 %v451, %v582
        %v584 = vpop.f32.mrf.mxu0
        %v585 = vadd.f32 %v451, %v584
        %586 = vmatprep.mubr.f32.mxu0 0.0
        %587 = vmatmul.mubr.f32.gmra.mxu0 %v487
        %v588 = vpop.f32.mrf.mxu0
        %v589 = vadd.f32 %v456, %v588
        %v590 = vpop.f32.mrf.mxu0
        %v591 = vadd.f32 %v456, %v590
        %592 = vmatprep.mubr.f32.mxu0 0.0
        %593 = vmatmul.mubr.f32.gmra.mxu0 %v490
        %v594 = vpop.f32.mrf.mxu0
        %v595 = vadd.f32 %v461, %v594
        %v596 = vpop.f32.mrf.mxu0
        %v597 = vadd.f32 %v461, %v596
        %598 = vmatprep.mubr.f32.mxu0 0.0
        %599 = vmatmul.mubr.f32.gmra.mxu0 %v493
        %v600 = vpop.f32.mrf.mxu0
        %v601 = vadd.f32 %v466, %v600
        %v602 = vpop.f32.mrf.mxu0
        %v603 = vadd.f32 %v466, %v602
        %604 = vmatprep.mubr.f32.mxu0 0.0
        %605 = vmatmul.mubr.f32.gmra.mxu0 %v496
        %v606 = vpop.f32.mrf.mxu0
        %v607 = vadd.f32 %v471, %v606
        %v608 = vpop.f32.mrf.mxu0
        %v609 = vadd.f32 %v471, %v608
        %610 = vdwg.mxu0
        %611 = vmatprep.subr.mxu0 0.0
        %612 = vmatpush1.msra.mxu0 0.0
        %613 = vmatprep.subr.mxu0 0.0
        %614 = vmatpush1.msra.mxu0 0.0
        %615 = vmatprep.subr.mxu0 0.0
        %616 = vmatpush1.msra.mxu0 0.0
        %617 = vmatprep.subr.mxu0 0.0
        %618 = vmatpush1.msra.mxu0 0.0
        %619 = vmatprep.subr.mxu0 0.0
        %620 = vmatpush1.msra.mxu0 0.0
        %621 = vmatprep.subr.mxu0 0.0
        %622 = vmatpush1.msra.mxu0 0.0
        %623 = vmatprep.subr.mxu0 0.0
        %624 = vmatpush1.msra.mxu0 0.0
        %625 = vmatprep.subr.mxu0 0.0
        %626 = vmatpush1.msra.mxu0 0.0
        %627 = vmatprep.subr.mxu0 0.0
        %628 = vmatpush1.msra.mxu0 0.0
        %629 = vmatprep.subr.mxu0 0.0
        %630 = vmatpush1.msra.mxu0 0.0
        %631 = vmatprep.subr.mxu0 0.0
        %632 = vmatpush1.msra.mxu0 0.0
        %633 = vmatprep.subr.mxu0 %v416
        %634 = vmatpush1.msra.mxu0 %v415
        %635 = vmatprep.subr.mxu0 %v408
        %636 = vmatpush1.msra.mxu0 %v407
        %637 = vmatprep.subr.mxu0 %v372
        %638 = vmatpush1.msra.mxu0 %v370
        %639 = vmatprep.subr.mxu0 %v404
        %640 = vmatpush1.msra.mxu0 %v403
        %641 = vmatprep.subr.mxu0 %v400
        %642 = vmatpush1.msra.mxu0 %v399
        %643 = vmatprep.subr.mxu0 0.0
        %644 = vmatpush2.msra.mxu0 0.0
        %645 = vmatprep.subr.mxu0 0.0
        %646 = vmatpush2.msra.mxu0 0.0
        %647 = vmatprep.subr.mxu0 0.0
        %648 = vmatpush2.msra.mxu0 0.0
        %649 = vmatprep.subr.mxu0 0.0
        %650 = vmatpush2.msra.mxu0 0.0
        %651 = vmatprep.subr.mxu0 0.0
        %652 = vmatpush2.msra.mxu0 0.0
        %653 = vmatprep.subr.mxu0 0.0
        %654 = vmatpush2.msra.mxu0 0.0
        %655 = vmatprep.subr.mxu0 0.0
        %656 = vmatpush2.msra.mxu0 0.0
        %657 = vmatprep.subr.mxu0 0.0
        %658 = vmatpush2.msra.mxu0 0.0
        %659 = vmatprep.subr.mxu0 0.0
        %660 = vmatpush2.msra.mxu0 0.0
        %661 = vmatprep.subr.mxu0 0.0
        %662 = vmatpush2.msra.mxu0 0.0
        %663 = vmatprep.subr.mxu0 0.0
        %664 = vmatpush2.msra.mxu0 0.0
        %665 = vmatprep.subr.mxu0 0.0
        %666 = vmatpush2.msra.mxu0 0.0
        %667 = vmatprep.subr.mxu0 0.0
        %668 = vmatpush2.msra.mxu0 0.0
        %669 = vmatprep.subr.mxu0 0.0
        %670 = vmatpush2.msra.mxu0 0.0
        %671 = vmatprep.subr.mxu0 0.0
        %672 = vmatpush2.msra.mxu0 0.0
        %673 = vmatprep.subr.mxu0 0.0
        %674 = vmatpush2.msra.mxu0 0.0
        %675 = vmatprep.mubr.f32.mxu0 0.0
        %676 = vmatmul.mubr.f32.gmra.mxu0 %v475
        %v677 = vpop.f32.mrf.mxu0
        %v678 = vadd.f32 %v436, %v677
        %v679 = vpop.f32.mrf.mxu0
        %v680 = vadd.f32 %v436, %v679
        %681 = vmatprep.mubr.f32.mxu0 0.0
        %682 = vmatmul.mubr.f32.gmra.mxu0 %v478
        %v683 = vpop.f32.mrf.mxu0
        %v684 = vadd.f32 %v441, %v683
        %v685 = vpop.f32.mrf.mxu0
        %v686 = vadd.f32 %v441, %v685
        %687 = vmatprep.mubr.f32.mxu0 0.0
        %688 = vmatmul.mubr.f32.gmra.mxu0 %v481
        %v689 = vpop.f32.mrf.mxu0
        %v690 = vadd.f32 %v446, %v689
        %v691 = vpop.f32.mrf.mxu0
        %v692 = vadd.f32 %v446, %v691
        %693 = vmatprep.mubr.f32.mxu0 0.0
        %694 = vmatmul.mubr.f32.gmra.mxu0 %v484
        %v695 = vpop.f32.mrf.mxu0
        %v696 = vadd.f32 %v451, %v695
        %v697 = vpop.f32.mrf.mxu0
        %v698 = vadd.f32 %v451, %v697
        %699 = vmatprep.mubr.f32.mxu0 0.0
        %700 = vmatmul.mubr.f32.gmra.mxu0 %v487
        %v701 = vpop.f32.mrf.mxu0
        %v702 = vadd.f32 %v456, %v701
        %v703 = vpop.f32.mrf.mxu0
        %v704 = vadd.f32 %v456, %v703
        %705 = vmatprep.mubr.f32.mxu0 0.0
        %706 = vmatmul.mubr.f32.gmra.mxu0 %v490
        %v707 = vpop.f32.mrf.mxu0
        %v708 = vadd.f32 %v461, %v707
        %v709 = vpop.f32.mrf.mxu0
        %v710 = vadd.f32 %v461, %v709
        %711 = vmatprep.mubr.f32.mxu0 0.0
        %712 = vmatmul.mubr.f32.gmra.mxu0 %v493
        %v713 = vpop.f32.mrf.mxu0
        %v714 = vadd.f32 %v466, %v713
        %v715 = vpop.f32.mrf.mxu0
        %v716 = vadd.f32 %v466, %v715
        %717 = vmatprep.mubr.f32.mxu0 0.0
        %718 = vmatmul.mubr.f32.gmra.mxu0 %v496
        %v719 = vpop.f32.mrf.mxu0
        %v720 = vadd.f32 %v471, %v719
        %v721 = vpop.f32.mrf.mxu0
        %v722 = vadd.f32 %v471, %v721
        %723 = vdwg.mxu0
        %v724 = vtanh.pop %v565
        %v725 = vtanh.pop %v567
        %v726 = vtanh.pop %v678
        %v727 = vtanh.pop %v680
        %v728 = vtanh.pop %v571
        %v729 = vtanh.pop %v573
        %v730 = vtanh.pop %v684
        %v731 = vtanh.pop %v686
        %v732 = vtanh.pop %v577
        %v733 = vtanh.pop %v579
        %v734 = vtanh.pop %v690
        %v735 = vtanh.pop %v692
        %v736 = vtanh.pop %v583
        %v737 = vtanh.pop %v585
        %v738 = vtanh.pop %v696
        %v739 = vtanh.pop %v698
        %v740 = vtanh.pop %v589
        %v741 = vtanh.pop %v591
        %v742 = vtanh.pop %v702
        %v743 = vtanh.pop %v704
        %v744 = vtanh.pop %v595
        %v745 = vtanh.pop %v597
        %v746 = vtanh.pop %v708
        %v747 = vtanh.pop %v710
        %v748 = vtanh.pop %v601
        %v749 = vtanh.pop %v603
        %v750 = vtanh.pop %v714
        %v751 = vtanh.pop %v716
        %v752 = vtanh.pop %v607
        %v753 = vtanh.pop %v609
        %v754 = vtanh.pop %v720
        %v755 = vtanh.pop %v722
        %v756 = vtanh.pop %v724
        %v757 = vtanh.pop %v725
        %v758 = vtanh.pop %v726
        %v759 = vtanh.pop %v727
        %v760 = vtanh.pop %v728
        %v761 = vtanh.pop %v729
        %v762 = vtanh.pop %v730
        %v763 = vtanh.pop %v731
        %v764 = vtanh.pop %v732
        %v765 = vtanh.pop %v733
        %v766 = vtanh.pop %v734
        %v767 = vtanh.pop %v735
        %v768 = vtanh.pop %v736
        %v769 = vtanh.pop %v737
        %v770 = vtanh.pop %v738
        %v771 = vtanh.pop %v739
        %v772 = vtanh.pop %v740
        %v773 = vtanh.pop %v741
        %v774 = vtanh.pop %v742
        %v775 = vtanh.pop %v743
        %v776 = vtanh.pop %v744
        %v777 = vtanh.pop %v745
        %v778 = vtanh.pop %v746
        %v779 = vtanh.pop %v747
        %v780 = vtanh.pop %v748
        %v781 = vtanh.pop %v749
        %v782 = vtanh.pop %v750
        %v783 = vtanh.pop %v751
        %v784 = vtanh.pop %v752
        %v785 = vtanh.pop %v753
        %v786 = vtanh.pop %v754
        %v787 = vtanh.pop %v755
        %v788 = vmul.f32 %v756, -5.0
        %v789 = vmul.f32 %v757, -5.0
        %v790 = vmul.f32 %v758, -5.0
        %v791 = vmul.f32 %v759, -5.0
        %v792 = vmul.f32 %v760, -5.0
        %v793 = vmul.f32 %v761, -5.0
        %v794 = vmul.f32 %v762, -5.0
        %v795 = vmul.f32 %v763, -5.0
        %v796 = vmul.f32 %v764, -5.0
        %v797 = vmul.f32 %v765, -5.0
        %v798 = vmul.f32 %v766, -5.0
        %v799 = vmul.f32 %v767, -5.0
        %v800 = vmul.f32 %v768, -5.0
        %v801 = vmul.f32 %v769, -5.0
        %v802 = vmul.f32 %v770, -5.0
        %v803 = vmul.f32 %v771, -5.0
        %v804 = vmul.f32 %v772, -5.0
        %v805 = vmul.f32 %v773, -5.0
        %v806 = vmul.f32 %v774, -5.0
        %v807 = vmul.f32 %v775, -5.0
        %v808 = vmul.f32 %v776, -5.0
        %v809 = vmul.f32 %v777, -5.0
        %v810 = vmul.f32 %v778, -5.0
        %v811 = vmul.f32 %v779, -5.0
        %v812 = vmul.f32 %v780, -5.0
        %v813 = vmul.f32 %v781, -5.0
        %v814 = vmul.f32 %v782, -5.0
        %v815 = vmul.f32 %v783, -5.0
        %v816 = vmul.f32 %v784, -5.0
        %v817 = vmul.f32 %v785, -5.0
        %v818 = vmul.f32 %v786, -5.0
        %v819 = vmul.f32 %v787, -5.0
        %v820 = vmul.f32 %v788, %v756
        %v821 = vmul.f32 %v789, %v757
        %v822 = vmul.f32 %v790, %v758
        %v823 = vmul.f32 %v791, %v759
        %v824 = vmul.f32 %v792, %v760
        %v825 = vmul.f32 %v793, %v761
        %v826 = vmul.f32 %v794, %v762
        %v827 = vmul.f32 %v795, %v763
        %v828 = vmul.f32 %v796, %v764
        %v829 = vmul.f32 %v797, %v765
        %v830 = vmul.f32 %v798, %v766
        %v831 = vmul.f32 %v799, %v767
        %v832 = vmul.f32 %v800, %v768
        %v833 = vmul.f32 %v801, %v769
        %v834 = vmul.f32 %v802, %v770
        %v835 = vmul.f32 %v803, %v771
        %v836 = vmul.f32 %v804, %v772
        %v837 = vmul.f32 %v805, %v773
        %v838 = vmul.f32 %v806, %v774
        %v839 = vmul.f32 %v807, %v775
        %v840 = vmul.f32 %v808, %v776
        %v841 = vmul.f32 %v809, %v777
        %v842 = vmul.f32 %v810, %v778
        %v843 = vmul.f32 %v811, %v779
        %v844 = vmul.f32 %v812, %v780
        %v845 = vmul.f32 %v813, %v781
        %v846 = vmul.f32 %v814, %v782
        %v847 = vmul.f32 %v815, %v783
        %v848 = vmul.f32 %v816, %v784
        %v849 = vmul.f32 %v817, %v785
        %v850 = vmul.f32 %v818, %v786
        %v851 = vmul.f32 %v819, %v787
        %v852 = vmul.f32 %v820, 1.442695
        %v853 = vpow.pop %v852
        %v854 = vmul.f32 %v821, 1.442695
        %v855 = vpow.pop %v854
        %v856 = vmul.f32 %v822, 1.442695
        %v857 = vpow.pop %v856
        %v858 = vmul.f32 %v823, 1.442695
        %v859 = vpow.pop %v858
        %v860 = vmul.f32 %v824, 1.442695
        %v861 = vpow.pop %v860
        %v862 = vmul.f32 %v825, 1.442695
        %v863 = vpow.pop %v862
        %v864 = vmul.f32 %v826, 1.442695
        %v865 = vpow.pop %v864
        %v866 = vmul.f32 %v827, 1.442695
        %v867 = vpow.pop %v866
        %v868 = vmul.f32 %v828, 1.442695
        %v869 = vpow.pop %v868
        %v870 = vmul.f32 %v829, 1.442695
        %v871 = vpow.pop %v870
        %v872 = vmul.f32 %v830, 1.442695
        %v873 = vpow.pop %v872
        %v874 = vmul.f32 %v831, 1.442695
        %v875 = vpow.pop %v874
        %v876 = vmul.f32 %v832, 1.442695
        %v877 = vpow.pop %v876
        %v878 = vmul.f32 %v833, 1.442695
        %v879 = vpow.pop %v878
        %v880 = vmul.f32 %v834, 1.442695
        %v881 = vpow.pop %v880
        %v882 = vmul.f32 %v835, 1.442695
        %v883 = vpow.pop %v882
        %v884 = vmul.f32 %v836, 1.442695
        %v885 = vpow.pop %v884
        %v886 = vmul.f32 %v837, 1.442695
        %v887 = vpow.pop %v886
        %v888 = vmul.f32 %v838, 1.442695
        %v889 = vpow.pop %v888
        %v890 = vmul.f32 %v839, 1.442695
        %v891 = vpow.pop %v890
        %v892 = vmul.f32 %v840, 1.442695
        %v893 = vpow.pop %v892
        %v894 = vmul.f32 %v841, 1.442695
        %v895 = vpow.pop %v894
        %v896 = vmul.f32 %v842, 1.442695
        %v897 = vpow.pop %v896
        %v898 = vmul.f32 %v843, 1.442695
        %v899 = vpow.pop %v898
        %v900 = vmul.f32 %v844, 1.442695
        %v901 = vpow.pop %v900
        %v902 = vmul.f32 %v845, 1.442695
        %v903 = vpow.pop %v902
        %v904 = vmul.f32 %v846, 1.442695
        %v905 = vpow.pop %v904
        %v906 = vmul.f32 %v847, 1.442695
        %v907 = vpow.pop %v906
        %v908 = vmul.f32 %v848, 1.442695
        %v909 = vpow.pop %v908
        %v910 = vmul.f32 %v849, 1.442695
        %v911 = vpow.pop %v910
        %v912 = vmul.f32 %v850, 1.442695
        %v913 = vpow.pop %v912
        %v914 = vmul.f32 %v851, 1.442695
        %v915 = vpow.pop %v914
        %v916 = vmul.f32 %v756, 5.0
        %v917 = vmul.f32 %v757, 5.0
        %v918 = vmul.f32 %v758, 5.0
        %v919 = vmul.f32 %v759, 5.0
        %v920 = vmul.f32 %v760, 5.0
        %v921 = vmul.f32 %v761, 5.0
        %v922 = vmul.f32 %v762, 5.0
        %v923 = vmul.f32 %v763, 5.0
        %v924 = vmul.f32 %v764, 5.0
        %v925 = vmul.f32 %v765, 5.0
        %v926 = vmul.f32 %v766, 5.0
        %v927 = vmul.f32 %v767, 5.0
        %v928 = vmul.f32 %v768, 5.0
        %v929 = vmul.f32 %v769, 5.0
        %v930 = vmul.f32 %v770, 5.0
        %v931 = vmul.f32 %v771, 5.0
        %v932 = vmul.f32 %v772, 5.0
        %v933 = vmul.f32 %v773, 5.0
        %v934 = vmul.f32 %v774, 5.0
        %v935 = vmul.f32 %v775, 5.0
        %v936 = vmul.f32 %v776, 5.0
        %v937 = vmul.f32 %v777, 5.0
        %v938 = vmul.f32 %v778, 5.0
        %v939 = vmul.f32 %v779, 5.0
        %v940 = vmul.f32 %v780, 5.0
        %v941 = vmul.f32 %v781, 5.0
        %v942 = vmul.f32 %v782, 5.0
        %v943 = vmul.f32 %v783, 5.0
        %v944 = vmul.f32 %v784, 5.0
        %v945 = vmul.f32 %v785, 5.0
        %v946 = vmul.f32 %v786, 5.0
        %v947 = vmul.f32 %v787, 5.0
        %v948 = vmul.f32 %v916, 1.442695
        %v949 = vpow.pop %v948
        %v950 = vmul.f32 %v917, 1.442695
        %v951 = vpow.pop %v950
        %v952 = vmul.f32 %v918, 1.442695
        %v953 = vpow.pop %v952
        %v954 = vmul.f32 %v919, 1.442695
        %v955 = vpow.pop %v954
        %v956 = vmul.f32 %v920, 1.442695
        %v957 = vpow.pop %v956
        %v958 = vmul.f32 %v921, 1.442695
        %v959 = vpow.pop %v958
        %v960 = vmul.f32 %v922, 1.442695
        %v961 = vpow.pop %v960
        %v962 = vmul.f32 %v923, 1.442695
        %v963 = vpow.pop %v962
        %v964 = vmul.f32 %v924, 1.442695
        %v965 = vpow.pop %v964
        %v966 = vmul.f32 %v925, 1.442695
        %v967 = vpow.pop %v966
        %v968 = vmul.f32 %v926, 1.442695
        %v969 = vpow.pop %v968
        %v970 = vmul.f32 %v927, 1.442695
        %v971 = vpow.pop %v970
        %v972 = vmul.f32 %v928, 1.442695
        %v973 = vpow.pop %v972
        %v974 = vmul.f32 %v929, 1.442695
        %v975 = vpow.pop %v974
        %v976 = vmul.f32 %v930, 1.442695
        %v977 = vpow.pop %v976
        %v978 = vmul.f32 %v931, 1.442695
        %v979 = vpow.pop %v978
        %v980 = vmul.f32 %v932, 1.442695
        %v981 = vpow.pop %v980
        %v982 = vmul.f32 %v933, 1.442695
        %v983 = vpow.pop %v982
        %v984 = vmul.f32 %v934, 1.442695
        %v985 = vpow.pop %v984
        %v986 = vmul.f32 %v935, 1.442695
        %v987 = vpow.pop %v986
        %v988 = vmul.f32 %v936, 1.442695
        %v989 = vpow.pop %v988
        %v990 = vmul.f32 %v937, 1.442695
        %v991 = vpow.pop %v990
        %v992 = vmul.f32 %v938, 1.442695
        %v993 = vpow.pop %v992
        %v994 = vmul.f32 %v939, 1.442695
        %v995 = vpow.pop %v994
        %v996 = vmul.f32 %v940, 1.442695
        %v997 = vpow.pop %v996
        %v998 = vmul.f32 %v941, 1.442695
        %v999 = vpow.pop %v998
        %v1000 = vmul.f32 %v942, 1.442695
        %v1001 = vpow.pop %v1000
        %v1002 = vmul.f32 %v943, 1.442695
        %v1003 = vpow.pop %v1002
        %v1004 = vmul.f32 %v944, 1.442695
        %v1005 = vpow.pop %v1004
        %v1006 = vmul.f32 %v945, 1.442695
        %v1007 = vpow.pop %v1006
        %v1008 = vmul.f32 %v946, 1.442695
        %v1009 = vpow.pop %v1008
        %v1010 = vmul.f32 %v947, 1.442695
        %v1011 = vpow.pop %v1010
        %v1012 = vmul.f32 %v788, 1.442695
        %v1013 = vpow.pop %v1012
        %v1014 = vmul.f32 %v789, 1.442695
        %v1015 = vpow.pop %v1014
        %v1016 = vmul.f32 %v790, 1.442695
        %v1017 = vpow.pop %v1016
        %v1018 = vmul.f32 %v791, 1.442695
        %v1019 = vpow.pop %v1018
        %v1020 = vmul.f32 %v792, 1.442695
        %v1021 = vpow.pop %v1020
        %v1022 = vmul.f32 %v793, 1.442695
        %v1023 = vpow.pop %v1022
        %v1024 = vmul.f32 %v794, 1.442695
        %v1025 = vpow.pop %v1024
        %v1026 = vmul.f32 %v795, 1.442695
        %v1027 = vpow.pop %v1026
        %v1028 = vmul.f32 %v796, 1.442695
        %v1029 = vpow.pop %v1028
        %v1030 = vmul.f32 %v797, 1.442695
        %v1031 = vpow.pop %v1030
        %v1032 = vmul.f32 %v798, 1.442695
        %v1033 = vpow.pop %v1032
        %v1034 = vmul.f32 %v799, 1.442695
        %v1035 = vpow.pop %v1034
        %v1036 = vmul.f32 %v800, 1.442695
        %v1037 = vpow.pop %v1036
        %v1038 = vmul.f32 %v801, 1.442695
        %v1039 = vpow.pop %v1038
        %v1040 = vmul.f32 %v802, 1.442695
        %v1041 = vpow.pop %v1040
        %v1042 = vmul.f32 %v803, 1.442695
        %v1043 = vpow.pop %v1042
        %v1044 = vmul.f32 %v804, 1.442695
        %v1045 = vpow.pop %v1044
        %v1046 = vmul.f32 %v805, 1.442695
        %v1047 = vpow.pop %v1046
        %v1048 = vmul.f32 %v806, 1.442695
        %v1049 = vpow.pop %v1048
        %v1050 = vmul.f32 %v807, 1.442695
        %v1051 = vpow.pop %v1050
        %v1052 = vmul.f32 %v808, 1.442695
        %v1053 = vpow.pop %v1052
        %v1054 = vmul.f32 %v809, 1.442695
        %v1055 = vpow.pop %v1054
        %v1056 = vmul.f32 %v810, 1.442695
        %v1057 = vpow.pop %v1056
        %v1058 = vmul.f32 %v811, 1.442695
        %v1059 = vpow.pop %v1058
        %v1060 = vmul.f32 %v812, 1.442695
        %v1061 = vpow.pop %v1060
        %v1062 = vmul.f32 %v813, 1.442695
        %v1063 = vpow.pop %v1062
        %v1064 = vmul.f32 %v814, 1.442695
        %v1065 = vpow.pop %v1064
        %v1066 = vmul.f32 %v815, 1.442695
        %v1067 = vpow.pop %v1066
        %v1068 = vmul.f32 %v816, 1.442695
        %v1069 = vpow.pop %v1068
        %v1070 = vmul.f32 %v817, 1.442695
        %v1071 = vpow.pop %v1070
        %v1072 = vmul.f32 %v818, 1.442695
        %v1073 = vpow.pop %v1072
        %v1074 = vmul.f32 %v819, 1.442695
        %v1075 = vpow.pop %v1074
        %v1076 = vmul.f32 %v1013, %v1013
        %v1077 = vmul.f32 %v1015, %v1015
        %v1078 = vmul.f32 %v1017, %v1017
        %v1079 = vmul.f32 %v1019, %v1019
        %v1080 = vmul.f32 %v1021, %v1021
        %v1081 = vmul.f32 %v1023, %v1023
        %v1082 = vmul.f32 %v1025, %v1025
        %v1083 = vmul.f32 %v1027, %v1027
        %v1084 = vmul.f32 %v1029, %v1029
        %v1085 = vmul.f32 %v1031, %v1031
        %v1086 = vmul.f32 %v1033, %v1033
        %v1087 = vmul.f32 %v1035, %v1035
        %v1088 = vmul.f32 %v1037, %v1037
        %v1089 = vmul.f32 %v1039, %v1039
        %v1090 = vmul.f32 %v1041, %v1041
        %v1091 = vmul.f32 %v1043, %v1043
        %v1092 = vmul.f32 %v1045, %v1045
        %v1093 = vmul.f32 %v1047, %v1047
        %v1094 = vmul.f32 %v1049, %v1049
        %v1095 = vmul.f32 %v1051, %v1051
        %v1096 = vmul.f32 %v1053, %v1053
        %v1097 = vmul.f32 %v1055, %v1055
        %v1098 = vmul.f32 %v1057, %v1057
        %v1099 = vmul.f32 %v1059, %v1059
        %v1100 = vmul.f32 %v1061, %v1061
        %v1101 = vmul.f32 %v1063, %v1063
        %v1102 = vmul.f32 %v1065, %v1065
        %v1103 = vmul.f32 %v1067, %v1067
        %v1104 = vmul.f32 %v1069, %v1069
        %v1105 = vmul.f32 %v1071, %v1071
        %v1106 = vmul.f32 %v1073, %v1073
        %v1107 = vmul.f32 %v1075, %v1075
        %v1108 = vmul.f32 %v853, %v1076
        %v1109 = vmul.f32 %v855, %v1077
        %v1110 = vmul.f32 %v857, %v1078
        %v1111 = vmul.f32 %v859, %v1079
        %v1112 = vmul.f32 %v861, %v1080
        %v1113 = vmul.f32 %v863, %v1081
        %v1114 = vmul.f32 %v865, %v1082
        %v1115 = vmul.f32 %v867, %v1083
        %v1116 = vmul.f32 %v869, %v1084
        %v1117 = vmul.f32 %v871, %v1085
        %v1118 = vmul.f32 %v873, %v1086
        %v1119 = vmul.f32 %v875, %v1087
        %v1120 = vmul.f32 %v877, %v1088
        %v1121 = vmul.f32 %v879, %v1089
        %v1122 = vmul.f32 %v881, %v1090
        %v1123 = vmul.f32 %v883, %v1091
        %v1124 = vmul.f32 %v885, %v1092
        %v1125 = vmul.f32 %v887, %v1093
        %v1126 = vmul.f32 %v889, %v1094
        %v1127 = vmul.f32 %v891, %v1095
        %v1128 = vmul.f32 %v893, %v1096
        %v1129 = vmul.f32 %v895, %v1097
        %v1130 = vmul.f32 %v897, %v1098
        %v1131 = vmul.f32 %v899, %v1099
        %v1132 = vmul.f32 %v901, %v1100
        %v1133 = vmul.f32 %v903, %v1101
        %v1134 = vmul.f32 %v905, %v1102
        %v1135 = vmul.f32 %v907, %v1103
        %v1136 = vmul.f32 %v909, %v1104
        %v1137 = vmul.f32 %v911, %v1105
        %v1138 = vmul.f32 %v913, %v1106
        %v1139 = vmul.f32 %v915, %v1107
        %v1140 = vmul.f32 %v853, %v1013
        %v1141 = vmul.f32 %v855, %v1015
        %v1142 = vmul.f32 %v857, %v1017
        %v1143 = vmul.f32 %v859, %v1019
        %v1144 = vmul.f32 %v861, %v1021
        %v1145 = vmul.f32 %v863, %v1023
        %v1146 = vmul.f32 %v865, %v1025
        %v1147 = vmul.f32 %v867, %v1027
        %v1148 = vmul.f32 %v869, %v1029
        %v1149 = vmul.f32 %v871, %v1031
        %v1150 = vmul.f32 %v873, %v1033
        %v1151 = vmul.f32 %v875, %v1035
        %v1152 = vmul.f32 %v877, %v1037
        %v1153 = vmul.f32 %v879, %v1039
        %v1154 = vmul.f32 %v881, %v1041
        %v1155 = vmul.f32 %v883, %v1043
        %v1156 = vmul.f32 %v885, %v1045
        %v1157 = vmul.f32 %v887, %v1047
        %v1158 = vmul.f32 %v889, %v1049
        %v1159 = vmul.f32 %v891, %v1051
        %v1160 = vmul.f32 %v893, %v1053
        %v1161 = vmul.f32 %v895, %v1055
        %v1162 = vmul.f32 %v897, %v1057
        %v1163 = vmul.f32 %v899, %v1059
        %v1164 = vmul.f32 %v901, %v1061
        %v1165 = vmul.f32 %v903, %v1063
        %v1166 = vmul.f32 %v905, %v1065
        %v1167 = vmul.f32 %v907, %v1067
        %v1168 = vmul.f32 %v909, %v1069
        %v1169 = vmul.f32 %v911, %v1071
        %v1170 = vmul.f32 %v913, %v1073
        %v1171 = vmul.f32 %v915, %v1075
        %v1172 = vmul.f32 %v853, %v949
        %v1173 = vmul.f32 %v855, %v951
        %v1174 = vmul.f32 %v857, %v953
        %v1175 = vmul.f32 %v859, %v955
        %v1176 = vmul.f32 %v861, %v957
        %v1177 = vmul.f32 %v863, %v959
        %v1178 = vmul.f32 %v865, %v961
        %v1179 = vmul.f32 %v867, %v963
        %v1180 = vmul.f32 %v869, %v965
        %v1181 = vmul.f32 %v871, %v967
        %v1182 = vmul.f32 %v873, %v969
        %v1183 = vmul.f32 %v875, %v971
        %v1184 = vmul.f32 %v877, %v973
        %v1185 = vmul.f32 %v879, %v975
        %v1186 = vmul.f32 %v881, %v977
        %v1187 = vmul.f32 %v883, %v979
        %v1188 = vmul.f32 %v885, %v981
        %v1189 = vmul.f32 %v887, %v983
        %v1190 = vmul.f32 %v889, %v985
        %v1191 = vmul.f32 %v891, %v987
        %v1192 = vmul.f32 %v893, %v989
        %v1193 = vmul.f32 %v895, %v991
        %v1194 = vmul.f32 %v897, %v993
        %v1195 = vmul.f32 %v899, %v995
        %v1196 = vmul.f32 %v901, %v997
        %v1197 = vmul.f32 %v903, %v999
        %v1198 = vmul.f32 %v905, %v1001
        %v1199 = vmul.f32 %v907, %v1003
        %v1200 = vmul.f32 %v909, %v1005
        %v1201 = vmul.f32 %v911, %v1007
        %v1202 = vmul.f32 %v913, %v1009
        %v1203 = vmul.f32 %v915, %v1011
        %v1204 = vmul.f32 %v949, %v949
        %v1205 = vmul.f32 %v951, %v951
        %v1206 = vmul.f32 %v953, %v953
        %v1207 = vmul.f32 %v955, %v955
        %v1208 = vmul.f32 %v957, %v957
        %v1209 = vmul.f32 %v959, %v959
        %v1210 = vmul.f32 %v961, %v961
        %v1211 = vmul.f32 %v963, %v963
        %v1212 = vmul.f32 %v965, %v965
        %v1213 = vmul.f32 %v967, %v967
        %v1214 = vmul.f32 %v969, %v969
        %v1215 = vmul.f32 %v971, %v971
        %v1216 = vmul.f32 %v973, %v973
        %v1217 = vmul.f32 %v975, %v975
        %v1218 = vmul.f32 %v977, %v977
        %v1219 = vmul.f32 %v979, %v979
        %v1220 = vmul.f32 %v981, %v981
        %v1221 = vmul.f32 %v983, %v983
        %v1222 = vmul.f32 %v985, %v985
        %v1223 = vmul.f32 %v987, %v987
        %v1224 = vmul.f32 %v989, %v989
        %v1225 = vmul.f32 %v991, %v991
        %v1226 = vmul.f32 %v993, %v993
        %v1227 = vmul.f32 %v995, %v995
        %v1228 = vmul.f32 %v997, %v997
        %v1229 = vmul.f32 %v999, %v999
        %v1230 = vmul.f32 %v1001, %v1001
        %v1231 = vmul.f32 %v1003, %v1003
        %v1232 = vmul.f32 %v1005, %v1005
        %v1233 = vmul.f32 %v1007, %v1007
        %v1234 = vmul.f32 %v1009, %v1009
        %v1235 = vmul.f32 %v1011, %v1011
        %v1236 = vmul.f32 %v853, %v1204
        %v1237 = vmul.f32 %v855, %v1205
        %v1238 = vmul.f32 %v857, %v1206
        %v1239 = vmul.f32 %v859, %v1207
        %v1240 = vmul.f32 %v861, %v1208
        %v1241 = vmul.f32 %v863, %v1209
        %v1242 = vmul.f32 %v865, %v1210
        %v1243 = vmul.f32 %v867, %v1211
        %v1244 = vmul.f32 %v869, %v1212
        %v1245 = vmul.f32 %v871, %v1213
        %v1246 = vmul.f32 %v873, %v1214
        %v1247 = vmul.f32 %v875, %v1215
        %v1248 = vmul.f32 %v877, %v1216
        %v1249 = vmul.f32 %v879, %v1217
        %v1250 = vmul.f32 %v881, %v1218
        %v1251 = vmul.f32 %v883, %v1219
        %v1252 = vmul.f32 %v885, %v1220
        %v1253 = vmul.f32 %v887, %v1221
        %v1254 = vmul.f32 %v889, %v1222
        %v1255 = vmul.f32 %v891, %v1223
        %v1256 = vmul.f32 %v893, %v1224
        %v1257 = vmul.f32 %v895, %v1225
        %v1258 = vmul.f32 %v897, %v1226
        %v1259 = vmul.f32 %v899, %v1227
        %v1260 = vmul.f32 %v901, %v1228
        %v1261 = vmul.f32 %v903, %v1229
        %v1262 = vmul.f32 %v905, %v1230
        %v1263 = vmul.f32 %v907, %v1231
        %v1264 = vmul.f32 %v909, %v1232
        %v1265 = vmul.f32 %v911, %v1233
        %v1266 = vmul.f32 %v913, %v1234
        %v1267 = vmul.f32 %v915, %v1235
        %v1268 = vld [vmem:[%s3] sm:$0xff]
        %v1269 = vld [vmem:[%s3 + $0x8] sm:$0xff]
        %v1270 = vld [vmem:[%s3 + $0x10] sm:$0xff]
        %v1271 = vld [vmem:[%s3 + $0x18] sm:$0xff]
        %v1272 = vld [vmem:[%s3 + $0x20] sm:$0xff]
        %v1273 = vld [vmem:[%s3 + $0x28] sm:$0xff]
        %v1274 = vld [vmem:[%s3 + $0x30] sm:$0xff]
        %v1275 = vld [vmem:[%s3 + $0x38] sm:$0xff]
        %v1276 = vld [vmem:[%s3 + $0x40] sm:$0xff]
        %v1277 = vld [vmem:[%s3 + $0x48] sm:$0xff]
        %v1278 = vld [vmem:[%s3 + $0x50] sm:$0xff]
        %v1279 = vld [vmem:[%s3 + $0x58] sm:$0xff]
        %v1280 = vld [vmem:[%s4] sm:$0xff]
        %v1281 = vld [vmem:[%s4 + $0x8] sm:$0xff]
        %v1282 = vld [vmem:[%s4 + $0x10] sm:$0xff]
        %v1283 = vld [vmem:[%s4 + $0x18] sm:$0xff]
        %1285 = vset.pattern.permute.xlu0 0
        %1286 = vperm.xlu0 %1285, %v1280
        %v1287 = vpop.permute.xlu0 %1286
        %1290 = vset.pattern.permute.xlu0 0
        %1291 = vperm.xlu0 %1290, %v1281
        %v1292 = vpop.permute.xlu0 %1291
        %1295 = vset.pattern.permute.xlu0 0
        %1296 = vperm.xlu0 %1295, %v1282
        %v1297 = vpop.permute.xlu0 %1296
        %1300 = vset.pattern.permute.xlu0 0
        %1301 = vperm.xlu0 %1300, %v1283
        %v1302 = vpop.permute.xlu0 %1301
        %vm1304 = vcmask 523264
        %v1306 = vsel %vm1304, %v1270, 0
        %v1309 = vsel %vm1304, %v1273, 0
        %v1312 = vsel %vm1304, %v1276, 0
        %v1315 = vsel %vm1304, %v1279, 0
        %1317 = vmatprep.subr.mxu0 %v1169
        %1318 = vmatpush1.msra.mxu0 %v1168
        %1319 = vmatprep.subr.mxu0 %v1165
        %1320 = vmatpush1.msra.mxu0 %v1164
        %1321 = vmatprep.subr.mxu0 %v1161
        %1322 = vmatpush1.msra.mxu0 %v1160
        %1323 = vmatprep.subr.mxu0 %v1157
        %1324 = vmatpush1.msra.mxu0 %v1156
        %1325 = vmatprep.subr.mxu0 %v1153
        %1326 = vmatpush1.msra.mxu0 %v1152
        %1327 = vmatprep.subr.mxu0 %v1149
        %1328 = vmatpush1.msra.mxu0 %v1148
        %1329 = vmatprep.subr.mxu0 %v1145
        %1330 = vmatpush1.msra.mxu0 %v1144
        %1331 = vmatprep.subr.mxu0 %v1141
        %1332 = vmatpush1.msra.mxu0 %v1140
        %1333 = vmatprep.subr.mxu0 %v1137
        %1334 = vmatpush1.msra.mxu0 %v1136
        %1335 = vmatprep.subr.mxu0 %v1133
        %1336 = vmatpush1.msra.mxu0 %v1132
        %1337 = vmatprep.subr.mxu0 %v1129
        %1338 = vmatpush1.msra.mxu0 %v1128
        %1339 = vmatprep.subr.mxu0 %v1125
        %1340 = vmatpush1.msra.mxu0 %v1124
        %1341 = vmatprep.subr.mxu0 %v1121
        %1342 = vmatpush1.msra.mxu0 %v1120
        %1343 = vmatprep.subr.mxu0 %v1117
        %1344 = vmatpush1.msra.mxu0 %v1116
        %1345 = vmatprep.subr.mxu0 %v1113
        %1346 = vmatpush1.msra.mxu0 %v1112
        %1347 = vmatprep.subr.mxu0 %v1109
        %1348 = vmatpush1.msra.mxu0 %v1108
        %1349 = vmatprep.subr.mxu0 %v1201
        %1350 = vmatpush2.msra.mxu0 %v1200
        %1351 = vmatprep.subr.mxu0 %v1197
        %1352 = vmatpush2.msra.mxu0 %v1196
        %1353 = vmatprep.subr.mxu0 %v1193
        %1354 = vmatpush2.msra.mxu0 %v1192
        %1355 = vmatprep.subr.mxu0 %v1189
        %1356 = vmatpush2.msra.mxu0 %v1188
        %1357 = vmatprep.subr.mxu0 %v1185
        %1358 = vmatpush2.msra.mxu0 %v1184
        %1359 = vmatprep.subr.mxu0 %v1181
        %1360 = vmatpush2.msra.mxu0 %v1180
        %1361 = vmatprep.subr.mxu0 %v1177
        %1362 = vmatpush2.msra.mxu0 %v1176
        %1363 = vmatprep.subr.mxu0 %v1173
        %1364 = vmatpush2.msra.mxu0 %v1172
        %1365 = vmatprep.subr.mxu0 %v911
        %1366 = vmatpush2.msra.mxu0 %v909
        %1367 = vmatprep.subr.mxu0 %v903
        %1368 = vmatpush2.msra.mxu0 %v901
        %1369 = vmatprep.subr.mxu0 %v895
        %1370 = vmatpush2.msra.mxu0 %v893
        %1371 = vmatprep.subr.mxu0 %v887
        %1372 = vmatpush2.msra.mxu0 %v885
        %1373 = vmatprep.subr.mxu0 %v879
        %1374 = vmatpush2.msra.mxu0 %v877
        %1375 = vmatprep.subr.mxu0 %v871
        %1376 = vmatpush2.msra.mxu0 %v869
        %1377 = vmatprep.subr.mxu0 %v863
        %1378 = vmatpush2.msra.mxu0 %v861
        %1379 = vmatprep.subr.mxu0 %v855
        %1380 = vmatpush2.msra.mxu0 %v853
        %1381 = vmatprep.mubr.f32.mxu0 %v1269
        %1382 = vmatmul.mubr.f32.gmra.mxu0 %v1268
        %v1383 = vpop.f32.mrf.mxu0
        %v1384 = vadd.f32 %v1287, %v1383
        %v1385 = vpop.f32.mrf.mxu0
        %v1386 = vadd.f32 %v1287, %v1385
        %1387 = vmatprep.mubr.f32.mxu0 %v1272
        %1388 = vmatmul.mubr.f32.gmra.mxu0 %v1271
        %v1389 = vpop.f32.mrf.mxu0
        %v1390 = vadd.f32 %v1292, %v1389
        %v1391 = vpop.f32.mrf.mxu0
        %v1392 = vadd.f32 %v1292, %v1391
        %1393 = vmatprep.mubr.f32.mxu0 %v1275
        %1394 = vmatmul.mubr.f32.gmra.mxu0 %v1274
        %v1395 = vpop.f32.mrf.mxu0
        %v1396 = vadd.f32 %v1297, %v1395
        %v1397 = vpop.f32.mrf.mxu0
        %v1398 = vadd.f32 %v1297, %v1397
        %1399 = vmatprep.mubr.f32.mxu0 %v1278
        %1400 = vmatmul.mubr.f32.gmra.mxu0 %v1277
        %v1401 = vpop.f32.mrf.mxu0
        %v1402 = vadd.f32 %v1302, %v1401
        %v1403 = vpop.f32.mrf.mxu0
        %v1404 = vadd.f32 %v1302, %v1403
        %1405 = vdwg.mxu0
        %1406 = vmatprep.subr.mxu0 0.0
        %1407 = vmatpush1.msra.mxu0 0.0
        %1408 = vmatprep.subr.mxu0 0.0
        %1409 = vmatpush1.msra.mxu0 0.0
        %1410 = vmatprep.subr.mxu0 0.0
        %1411 = vmatpush1.msra.mxu0 0.0
        %1412 = vmatprep.subr.mxu0 0.0
        %1413 = vmatpush1.msra.mxu0 0.0
        %1414 = vmatprep.subr.mxu0 0.0
        %1415 = vmatpush1.msra.mxu0 0.0
        %1416 = vmatprep.subr.mxu0 0.0
        %1417 = vmatpush1.msra.mxu0 0.0
        %1418 = vmatprep.subr.mxu0 0.0
        %1419 = vmatpush1.msra.mxu0 0.0
        %1420 = vmatprep.subr.mxu0 0.0
        %1421 = vmatpush1.msra.mxu0 0.0
        %1422 = vmatprep.subr.mxu0 %v1265
        %1423 = vmatpush1.msra.mxu0 %v1264
        %1424 = vmatprep.subr.mxu0 %v1261
        %1425 = vmatpush1.msra.mxu0 %v1260
        %1426 = vmatprep.subr.mxu0 %v1257
        %1427 = vmatpush1.msra.mxu0 %v1256
        %1428 = vmatprep.subr.mxu0 %v1253
        %1429 = vmatpush1.msra.mxu0 %v1252
        %1430 = vmatprep.subr.mxu0 %v1249
        %1431 = vmatpush1.msra.mxu0 %v1248
        %1432 = vmatprep.subr.mxu0 %v1245
        %1433 = vmatpush1.msra.mxu0 %v1244
        %1434 = vmatprep.subr.mxu0 %v1241
        %1435 = vmatpush1.msra.mxu0 %v1240
        %1436 = vmatprep.subr.mxu0 %v1237
        %1437 = vmatpush1.msra.mxu0 %v1236
        %1438 = vmatprep.subr.mxu0 0.0
        %1439 = vmatpush2.msra.mxu0 0.0
        %1440 = vmatprep.subr.mxu0 0.0
        %1441 = vmatpush2.msra.mxu0 0.0
        %1442 = vmatprep.subr.mxu0 0.0
        %1443 = vmatpush2.msra.mxu0 0.0
        %1444 = vmatprep.subr.mxu0 0.0
        %1445 = vmatpush2.msra.mxu0 0.0
        %1446 = vmatprep.subr.mxu0 0.0
        %1447 = vmatpush2.msra.mxu0 0.0
        %1448 = vmatprep.subr.mxu0 0.0
        %1449 = vmatpush2.msra.mxu0 0.0
        %1450 = vmatprep.subr.mxu0 0.0
        %1451 = vmatpush2.msra.mxu0 0.0
        %1452 = vmatprep.subr.mxu0 0.0
        %1453 = vmatpush2.msra.mxu0 0.0
        %1454 = vmatprep.subr.mxu0 0.0
        %1455 = vmatpush2.msra.mxu0 0.0
        %1456 = vmatprep.subr.mxu0 0.0
        %1457 = vmatpush2.msra.mxu0 0.0
        %1458 = vmatprep.subr.mxu0 0.0
        %1459 = vmatpush2.msra.mxu0 0.0
        %1460 = vmatprep.subr.mxu0 0.0
        %1461 = vmatpush2.msra.mxu0 0.0
        %1462 = vmatprep.subr.mxu0 0.0
        %1463 = vmatpush2.msra.mxu0 0.0
        %1464 = vmatprep.subr.mxu0 0.0
        %1465 = vmatpush2.msra.mxu0 0.0
        %1466 = vmatprep.subr.mxu0 0.0
        %1467 = vmatpush2.msra.mxu0 0.0
        %1468 = vmatprep.subr.mxu0 0.0
        %1469 = vmatpush2.msra.mxu0 0.0
        %1470 = vmatprep.mubr.f32.mxu0 0.0
        %1471 = vmatmul.mubr.f32.gmra.mxu0 %v1306
        %v1472 = vpop.f32.mrf.mxu0
        %v1473 = vadd.f32 %v1384, %v1472
        %v1474 = vpop.f32.mrf.mxu0
        %v1475 = vadd.f32 %v1386, %v1474
        %1476 = vmatprep.mubr.f32.mxu0 0.0
        %1477 = vmatmul.mubr.f32.gmra.mxu0 %v1309
        %v1478 = vpop.f32.mrf.mxu0
        %v1479 = vadd.f32 %v1390, %v1478
        %v1480 = vpop.f32.mrf.mxu0
        %v1481 = vadd.f32 %v1392, %v1480
        %1482 = vmatprep.mubr.f32.mxu0 0.0
        %1483 = vmatmul.mubr.f32.gmra.mxu0 %v1312
        %v1484 = vpop.f32.mrf.mxu0
        %v1485 = vadd.f32 %v1396, %v1484
        %v1486 = vpop.f32.mrf.mxu0
        %v1487 = vadd.f32 %v1398, %v1486
        %1488 = vmatprep.mubr.f32.mxu0 0.0
        %1489 = vmatmul.mubr.f32.gmra.mxu0 %v1315
        %v1490 = vpop.f32.mrf.mxu0
        %v1491 = vadd.f32 %v1402, %v1490
        %v1492 = vpop.f32.mrf.mxu0
        %v1493 = vadd.f32 %v1404, %v1492
        %1494 = vdwg.mxu0
        %1495 = vmatprep.subr.mxu0 %v1171
        %1496 = vmatpush1.msra.mxu0 %v1170
        %1497 = vmatprep.subr.mxu0 %v1167
        %1498 = vmatpush1.msra.mxu0 %v1166
        %1499 = vmatprep.subr.mxu0 %v1163
        %1500 = vmatpush1.msra.mxu0 %v1162
        %1501 = vmatprep.subr.mxu0 %v1159
        %1502 = vmatpush1.msra.mxu0 %v1158
        %1503 = vmatprep.subr.mxu0 %v1155
        %1504 = vmatpush1.msra.mxu0 %v1154
        %1505 = vmatprep.subr.mxu0 %v1151
        %1506 = vmatpush1.msra.mxu0 %v1150
        %1507 = vmatprep.subr.mxu0 %v1147
        %1508 = vmatpush1.msra.mxu0 %v1146
        %1509 = vmatprep.subr.mxu0 %v1143
        %1510 = vmatpush1.msra.mxu0 %v1142
        %1511 = vmatprep.subr.mxu0 %v1139
        %1512 = vmatpush1.msra.mxu0 %v1138
        %1513 = vmatprep.subr.mxu0 %v1135
        %1514 = vmatpush1.msra.mxu0 %v1134
        %1515 = vmatprep.subr.mxu0 %v1131
        %1516 = vmatpush1.msra.mxu0 %v1130
        %1517 = vmatprep.subr.mxu0 %v1127
        %1518 = vmatpush1.msra.mxu0 %v1126
        %1519 = vmatprep.subr.mxu0 %v1123
        %1520 = vmatpush1.msra.mxu0 %v1122
        %1521 = vmatprep.subr.mxu0 %v1119
        %1522 = vmatpush1.msra.mxu0 %v1118
        %1523 = vmatprep.subr.mxu0 %v1115
        %1524 = vmatpush1.msra.mxu0 %v1114
        %1525 = vmatprep.subr.mxu0 %v1111
        %1526 = vmatpush1.msra.mxu0 %v1110
        %1527 = vmatprep.subr.mxu0 %v1203
        %1528 = vmatpush2.msra.mxu0 %v1202
        %1529 = vmatprep.subr.mxu0 %v1199
        %1530 = vmatpush2.msra.mxu0 %v1198
        %1531 = vmatprep.subr.mxu0 %v1195
        %1532 = vmatpush2.msra.mxu0 %v1194
        %1533 = vmatprep.subr.mxu0 %v1191
        %1534 = vmatpush2.msra.mxu0 %v1190
        %1535 = vmatprep.subr.mxu0 %v1187
        %1536 = vmatpush2.msra.mxu0 %v1186
        %1537 = vmatprep.subr.mxu0 %v1183
        %1538 = vmatpush2.msra.mxu0 %v1182
        %1539 = vmatprep.subr.mxu0 %v1179
        %1540 = vmatpush2.msra.mxu0 %v1178
        %1541 = vmatprep.subr.mxu0 %v1175
        %1542 = vmatpush2.msra.mxu0 %v1174
        %1543 = vmatprep.subr.mxu0 %v915
        %1544 = vmatpush2.msra.mxu0 %v913
        %1545 = vmatprep.subr.mxu0 %v907
        %1546 = vmatpush2.msra.mxu0 %v905
        %1547 = vmatprep.subr.mxu0 %v899
        %1548 = vmatpush2.msra.mxu0 %v897
        %1549 = vmatprep.subr.mxu0 %v891
        %1550 = vmatpush2.msra.mxu0 %v889
        %1551 = vmatprep.subr.mxu0 %v883
        %1552 = vmatpush2.msra.mxu0 %v881
        %1553 = vmatprep.subr.mxu0 %v875
        %1554 = vmatpush2.msra.mxu0 %v873
        %1555 = vmatprep.subr.mxu0 %v867
        %1556 = vmatpush2.msra.mxu0 %v865
        %1557 = vmatprep.subr.mxu0 %v859
        %1558 = vmatpush2.msra.mxu0 %v857
        %1559 = vmatprep.mubr.f32.mxu0 %v1269
        %1560 = vmatmul.mubr.f32.gmra.mxu0 %v1268
        %v1561 = vpop.f32.mrf.mxu0
        %v1562 = vadd.f32 %v1287, %v1561
        %v1563 = vpop.f32.mrf.mxu0
        %v1564 = vadd.f32 %v1287, %v1563
        %1565 = vmatprep.mubr.f32.mxu0 %v1272
        %1566 = vmatmul.mubr.f32.gmra.mxu0 %v1271
        %v1567 = vpop.f32.mrf.mxu0
        %v1568 = vadd.f32 %v1292, %v1567
        %v1569 = vpop.f32.mrf.mxu0
        %v1570 = vadd.f32 %v1292, %v1569
        %1571 = vmatprep.mubr.f32.mxu0 %v1275
        %1572 = vmatmul.mubr.f32.gmra.mxu0 %v1274
        %v1573 = vpop.f32.mrf.mxu0
        %v1574 = vadd.f32 %v1297, %v1573
        %v1575 = vpop.f32.mrf.mxu0
        %v1576 = vadd.f32 %v1297, %v1575
        %1577 = vmatprep.mubr.f32.mxu0 %v1278
        %1578 = vmatmul.mubr.f32.gmra.mxu0 %v1277
        %v1579 = vpop.f32.mrf.mxu0
        %v1580 = vadd.f32 %v1302, %v1579
        %v1581 = vpop.f32.mrf.mxu0
        %v1582 = vadd.f32 %v1302, %v1581
        %1583 = vdwg.mxu0
        %1584 = vmatprep.subr.mxu0 0.0
        %1585 = vmatpush1.msra.mxu0 0.0
        %1586 = vmatprep.subr.mxu0 0.0
        %1587 = vmatpush1.msra.mxu0 0.0
        %1588 = vmatprep.subr.mxu0 0.0
        %1589 = vmatpush1.msra.mxu0 0.0
        %1590 = vmatprep.subr.mxu0 0.0
        %1591 = vmatpush1.msra.mxu0 0.0
        %1592 = vmatprep.subr.mxu0 0.0
        %1593 = vmatpush1.msra.mxu0 0.0
        %1594 = vmatprep.subr.mxu0 0.0
        %1595 = vmatpush1.msra.mxu0 0.0
        %1596 = vmatprep.subr.mxu0 0.0
        %1597 = vmatpush1.msra.mxu0 0.0
        %1598 = vmatprep.subr.mxu0 0.0
        %1599 = vmatpush1.msra.mxu0 0.0
        %1600 = vmatprep.subr.mxu0 %v1267
        %1601 = vmatpush1.msra.mxu0 %v1266
        %1602 = vmatprep.subr.mxu0 %v1263
        %1603 = vmatpush1.msra.mxu0 %v1262
        %1604 = vmatprep.subr.mxu0 %v1259
        %1605 = vmatpush1.msra.mxu0 %v1258
        %1606 = vmatprep.subr.mxu0 %v1255
        %1607 = vmatpush1.msra.mxu0 %v1254
        %1608 = vmatprep.subr.mxu0 %v1251
        %1609 = vmatpush1.msra.mxu0 %v1250
        %1610 = vmatprep.subr.mxu0 %v1247
        %1611 = vmatpush1.msra.mxu0 %v1246
        %1612 = vmatprep.subr.mxu0 %v1243
        %1613 = vmatpush1.msra.mxu0 %v1242
        %1614 = vmatprep.subr.mxu0 %v1239
        %1615 = vmatpush1.msra.mxu0 %v1238
        %1616 = vmatprep.subr.mxu0 0.0
        %1617 = vmatpush2.msra.mxu0 0.0
        %1618 = vmatprep.subr.mxu0 0.0
        %1619 = vmatpush2.msra.mxu0 0.0
        %1620 = vmatprep.subr.mxu0 0.0
        %1621 = vmatpush2.msra.mxu0 0.0
        %1622 = vmatprep.subr.mxu0 0.0
        %1623 = vmatpush2.msra.mxu0 0.0
        %1624 = vmatprep.subr.mxu0 0.0
        %1625 = vmatpush2.msra.mxu0 0.0
        %1626 = vmatprep.subr.mxu0 0.0
        %1627 = vmatpush2.msra.mxu0 0.0
        %1628 = vmatprep.subr.mxu0 0.0
        %1629 = vmatpush2.msra.mxu0 0.0
        %1630 = vmatprep.subr.mxu0 0.0
        %1631 = vmatpush2.msra.mxu0 0.0
        %1632 = vmatprep.subr.mxu0 0.0
        %1633 = vmatpush2.msra.mxu0 0.0
        %1634 = vmatprep.subr.mxu0 0.0
        %1635 = vmatpush2.msra.mxu0 0.0
        %1636 = vmatprep.subr.mxu0 0.0
        %1637 = vmatpush2.msra.mxu0 0.0
        %1638 = vmatprep.subr.mxu0 0.0
        %1639 = vmatpush2.msra.mxu0 0.0
        %1640 = vmatprep.subr.mxu0 0.0
        %1641 = vmatpush2.msra.mxu0 0.0
        %1642 = vmatprep.subr.mxu0 0.0
        %1643 = vmatpush2.msra.mxu0 0.0
        %1644 = vmatprep.subr.mxu0 0.0
        %1645 = vmatpush2.msra.mxu0 0.0
        %1646 = vmatprep.subr.mxu0 0.0
        %1647 = vmatpush2.msra.mxu0 0.0
        %1648 = vmatprep.mubr.f32.mxu0 0.0
        %1649 = vmatmul.mubr.f32.gmra.mxu0 %v1306
        %v1650 = vpop.f32.mrf.mxu0
        %v1651 = vadd.f32 %v1562, %v1650
        %v1652 = vpop.f32.mrf.mxu0
        %v1653 = vadd.f32 %v1564, %v1652
        %1654 = vmatprep.mubr.f32.mxu0 0.0
        %1655 = vmatmul.mubr.f32.gmra.mxu0 %v1309
        %v1656 = vpop.f32.mrf.mxu0
        %v1657 = vadd.f32 %v1568, %v1656
        %v1658 = vpop.f32.mrf.mxu0
        %v1659 = vadd.f32 %v1570, %v1658
        %1660 = vmatprep.mubr.f32.mxu0 0.0
        %1661 = vmatmul.mubr.f32.gmra.mxu0 %v1312
        %v1662 = vpop.f32.mrf.mxu0
        %v1663 = vadd.f32 %v1574, %v1662
        %v1664 = vpop.f32.mrf.mxu0
        %v1665 = vadd.f32 %v1576, %v1664
        %1666 = vmatprep.mubr.f32.mxu0 0.0
        %1667 = vmatmul.mubr.f32.gmra.mxu0 %v1315
        %v1668 = vpop.f32.mrf.mxu0
        %v1669 = vadd.f32 %v1580, %v1668
        %v1670 = vpop.f32.mrf.mxu0
        %v1671 = vadd.f32 %v1582, %v1670
        %1672 = vdwg.mxu0
        %v1673 = vtanh.pop %v1473
        %v1674 = vtanh.pop %v1475
        %v1675 = vtanh.pop %v1651
        %v1676 = vtanh.pop %v1653
        %v1677 = vtanh.pop %v1479
        %v1678 = vtanh.pop %v1481
        %v1679 = vtanh.pop %v1657
        %v1680 = vtanh.pop %v1659
        %v1681 = vtanh.pop %v1485
        %v1682 = vtanh.pop %v1487
        %v1683 = vtanh.pop %v1663
        %v1684 = vtanh.pop %v1665
        %v1685 = vtanh.pop %v1491
        %v1686 = vtanh.pop %v1493
        %v1687 = vtanh.pop %v1669
        %v1688 = vtanh.pop %v1671
        %v1689 = vtanh.pop %v1673
        %v1690 = vtanh.pop %v1674
        %v1691 = vtanh.pop %v1675
        %v1692 = vtanh.pop %v1676
        %v1693 = vtanh.pop %v1677
        %v1694 = vtanh.pop %v1678
        %v1695 = vtanh.pop %v1679
        %v1696 = vtanh.pop %v1680
        %v1697 = vtanh.pop %v1681
        %v1698 = vtanh.pop %v1682
        %v1699 = vtanh.pop %v1683
        %v1700 = vtanh.pop %v1684
        %v1701 = vtanh.pop %v1685
        %v1702 = vtanh.pop %v1686
        %v1703 = vtanh.pop %v1687
        %v1704 = vtanh.pop %v1688
        %v1705 = vmul.f32 %v1689, -5.0
        %v1706 = vmul.f32 %v1690, -5.0
        %v1707 = vmul.f32 %v1691, -5.0
        %v1708 = vmul.f32 %v1692, -5.0
        %v1709 = vmul.f32 %v1693, -5.0
        %v1710 = vmul.f32 %v1694, -5.0
        %v1711 = vmul.f32 %v1695, -5.0
        %v1712 = vmul.f32 %v1696, -5.0
        %v1713 = vmul.f32 %v1697, -5.0
        %v1714 = vmul.f32 %v1698, -5.0
        %v1715 = vmul.f32 %v1699, -5.0
        %v1716 = vmul.f32 %v1700, -5.0
        %v1717 = vmul.f32 %v1701, -5.0
        %v1718 = vmul.f32 %v1702, -5.0
        %v1719 = vmul.f32 %v1703, -5.0
        %v1720 = vmul.f32 %v1704, -5.0
        %v1721 = vmul.f32 %v1705, %v1689
        %v1722 = vmul.f32 %v1706, %v1690
        %v1723 = vmul.f32 %v1707, %v1691
        %v1724 = vmul.f32 %v1708, %v1692
        %v1725 = vmul.f32 %v1709, %v1693
        %v1726 = vmul.f32 %v1710, %v1694
        %v1727 = vmul.f32 %v1711, %v1695
        %v1728 = vmul.f32 %v1712, %v1696
        %v1729 = vmul.f32 %v1713, %v1697
        %v1730 = vmul.f32 %v1714, %v1698
        %v1731 = vmul.f32 %v1715, %v1699
        %v1732 = vmul.f32 %v1716, %v1700
        %v1733 = vmul.f32 %v1717, %v1701
        %v1734 = vmul.f32 %v1718, %v1702
        %v1735 = vmul.f32 %v1719, %v1703
        %v1736 = vmul.f32 %v1720, %v1704
        %v1737 = vmul.f32 %v1721, 1.442695
        %v1738 = vpow.pop %v1737
        %v1739 = vmul.f32 %v1722, 1.442695
        %v1740 = vpow.pop %v1739
        %v1741 = vmul.f32 %v1723, 1.442695
        %v1742 = vpow.pop %v1741
        %v1743 = vmul.f32 %v1724, 1.442695
        %v1744 = vpow.pop %v1743
        %v1745 = vmul.f32 %v1725, 1.442695
        %v1746 = vpow.pop %v1745
        %v1747 = vmul.f32 %v1726, 1.442695
        %v1748 = vpow.pop %v1747
        %v1749 = vmul.f32 %v1727, 1.442695
        %v1750 = vpow.pop %v1749
        %v1751 = vmul.f32 %v1728, 1.442695
        %v1752 = vpow.pop %v1751
        %v1753 = vmul.f32 %v1729, 1.442695
        %v1754 = vpow.pop %v1753
        %v1755 = vmul.f32 %v1730, 1.442695
        %v1756 = vpow.pop %v1755
        %v1757 = vmul.f32 %v1731, 1.442695
        %v1758 = vpow.pop %v1757
        %v1759 = vmul.f32 %v1732, 1.442695
        %v1760 = vpow.pop %v1759
        %v1761 = vmul.f32 %v1733, 1.442695
        %v1762 = vpow.pop %v1761
        %v1763 = vmul.f32 %v1734, 1.442695
        %v1764 = vpow.pop %v1763
        %v1765 = vmul.f32 %v1735, 1.442695
        %v1766 = vpow.pop %v1765
        %v1767 = vmul.f32 %v1736, 1.442695
        %v1768 = vpow.pop %v1767
        %v1769 = vmul.f32 %v1689, 5.0
        %v1770 = vmul.f32 %v1690, 5.0
        %v1771 = vmul.f32 %v1691, 5.0
        %v1772 = vmul.f32 %v1692, 5.0
        %v1773 = vmul.f32 %v1693, 5.0
        %v1774 = vmul.f32 %v1694, 5.0
        %v1775 = vmul.f32 %v1695, 5.0
        %v1776 = vmul.f32 %v1696, 5.0
        %v1777 = vmul.f32 %v1697, 5.0
        %v1778 = vmul.f32 %v1698, 5.0
        %v1779 = vmul.f32 %v1699, 5.0
        %v1780 = vmul.f32 %v1700, 5.0
        %v1781 = vmul.f32 %v1701, 5.0
        %v1782 = vmul.f32 %v1702, 5.0
        %v1783 = vmul.f32 %v1703, 5.0
        %v1784 = vmul.f32 %v1704, 5.0
        %v1785 = vmul.f32 %v1769, 1.442695
        %v1786 = vpow.pop %v1785
        %v1787 = vmul.f32 %v1770, 1.442695
        %v1788 = vpow.pop %v1787
        %v1789 = vmul.f32 %v1771, 1.442695
        %v1790 = vpow.pop %v1789
        %v1791 = vmul.f32 %v1772, 1.442695
        %v1792 = vpow.pop %v1791
        %v1793 = vmul.f32 %v1773, 1.442695
        %v1794 = vpow.pop %v1793
        %v1795 = vmul.f32 %v1774, 1.442695
        %v1796 = vpow.pop %v1795
        %v1797 = vmul.f32 %v1775, 1.442695
        %v1798 = vpow.pop %v1797
        %v1799 = vmul.f32 %v1776, 1.442695
        %v1800 = vpow.pop %v1799
        %v1801 = vmul.f32 %v1777, 1.442695
        %v1802 = vpow.pop %v1801
        %v1803 = vmul.f32 %v1778, 1.442695
        %v1804 = vpow.pop %v1803
        %v1805 = vmul.f32 %v1779, 1.442695
        %v1806 = vpow.pop %v1805
        %v1807 = vmul.f32 %v1780, 1.442695
        %v1808 = vpow.pop %v1807
        %v1809 = vmul.f32 %v1781, 1.442695
        %v1810 = vpow.pop %v1809
        %v1811 = vmul.f32 %v1782, 1.442695
        %v1812 = vpow.pop %v1811
        %v1813 = vmul.f32 %v1783, 1.442695
        %v1814 = vpow.pop %v1813
        %v1815 = vmul.f32 %v1784, 1.442695
        %v1816 = vpow.pop %v1815
        %v1817 = vmul.f32 %v1705, 1.442695
        %v1818 = vpow.pop %v1817
        %v1819 = vmul.f32 %v1706, 1.442695
        %v1820 = vpow.pop %v1819
        %v1821 = vmul.f32 %v1707, 1.442695
        %v1822 = vpow.pop %v1821
        %v1823 = vmul.f32 %v1708, 1.442695
        %v1824 = vpow.pop %v1823
        %v1825 = vmul.f32 %v1709, 1.442695
        %v1826 = vpow.pop %v1825
        %v1827 = vmul.f32 %v1710, 1.442695
        %v1828 = vpow.pop %v1827
        %v1829 = vmul.f32 %v1711, 1.442695
        %v1830 = vpow.pop %v1829
        %v1831 = vmul.f32 %v1712, 1.442695
        %v1832 = vpow.pop %v1831
        %v1833 = vmul.f32 %v1713, 1.442695
        %v1834 = vpow.pop %v1833
        %v1835 = vmul.f32 %v1714, 1.442695
        %v1836 = vpow.pop %v1835
        %v1837 = vmul.f32 %v1715, 1.442695
        %v1838 = vpow.pop %v1837
        %v1839 = vmul.f32 %v1716, 1.442695
        %v1840 = vpow.pop %v1839
        %v1841 = vmul.f32 %v1717, 1.442695
        %v1842 = vpow.pop %v1841
        %v1843 = vmul.f32 %v1718, 1.442695
        %v1844 = vpow.pop %v1843
        %v1845 = vmul.f32 %v1719, 1.442695
        %v1846 = vpow.pop %v1845
        %v1847 = vmul.f32 %v1720, 1.442695
        %v1848 = vpow.pop %v1847
        %v1849 = vmul.f32 %v1818, %v1818
        %v1850 = vmul.f32 %v1820, %v1820
        %v1851 = vmul.f32 %v1822, %v1822
        %v1852 = vmul.f32 %v1824, %v1824
        %v1853 = vmul.f32 %v1826, %v1826
        %v1854 = vmul.f32 %v1828, %v1828
        %v1855 = vmul.f32 %v1830, %v1830
        %v1856 = vmul.f32 %v1832, %v1832
        %v1857 = vmul.f32 %v1834, %v1834
        %v1858 = vmul.f32 %v1836, %v1836
        %v1859 = vmul.f32 %v1838, %v1838
        %v1860 = vmul.f32 %v1840, %v1840
        %v1861 = vmul.f32 %v1842, %v1842
        %v1862 = vmul.f32 %v1844, %v1844
        %v1863 = vmul.f32 %v1846, %v1846
        %v1864 = vmul.f32 %v1848, %v1848
        %v1865 = vmul.f32 %v1738, %v1849
        %v1866 = vmul.f32 %v1740, %v1850
        %v1867 = vmul.f32 %v1742, %v1851
        %v1868 = vmul.f32 %v1744, %v1852
        %v1869 = vmul.f32 %v1746, %v1853
        %v1870 = vmul.f32 %v1748, %v1854
        %v1871 = vmul.f32 %v1750, %v1855
        %v1872 = vmul.f32 %v1752, %v1856
        %v1873 = vmul.f32 %v1754, %v1857
        %v1874 = vmul.f32 %v1756, %v1858
        %v1875 = vmul.f32 %v1758, %v1859
        %v1876 = vmul.f32 %v1760, %v1860
        %v1877 = vmul.f32 %v1762, %v1861
        %v1878 = vmul.f32 %v1764, %v1862
        %v1879 = vmul.f32 %v1766, %v1863
        %v1880 = vmul.f32 %v1768, %v1864
        %v1881 = vmul.f32 %v1738, %v1818
        %v1882 = vmul.f32 %v1740, %v1820
        %v1883 = vmul.f32 %v1742, %v1822
        %v1884 = vmul.f32 %v1744, %v1824
        %v1885 = vmul.f32 %v1746, %v1826
        %v1886 = vmul.f32 %v1748, %v1828
        %v1887 = vmul.f32 %v1750, %v1830
        %v1888 = vmul.f32 %v1752, %v1832
        %v1889 = vmul.f32 %v1754, %v1834
        %v1890 = vmul.f32 %v1756, %v1836
        %v1891 = vmul.f32 %v1758, %v1838
        %v1892 = vmul.f32 %v1760, %v1840
        %v1893 = vmul.f32 %v1762, %v1842
        %v1894 = vmul.f32 %v1764, %v1844
        %v1895 = vmul.f32 %v1766, %v1846
        %v1896 = vmul.f32 %v1768, %v1848
        %v1897 = vmul.f32 %v1738, %v1786
        %v1898 = vmul.f32 %v1740, %v1788
        %v1899 = vmul.f32 %v1742, %v1790
        %v1900 = vmul.f32 %v1744, %v1792
        %v1901 = vmul.f32 %v1746, %v1794
        %v1902 = vmul.f32 %v1748, %v1796
        %v1903 = vmul.f32 %v1750, %v1798
        %v1904 = vmul.f32 %v1752, %v1800
        %v1905 = vmul.f32 %v1754, %v1802
        %v1906 = vmul.f32 %v1756, %v1804
        %v1907 = vmul.f32 %v1758, %v1806
        %v1908 = vmul.f32 %v1760, %v1808
        %v1909 = vmul.f32 %v1762, %v1810
        %v1910 = vmul.f32 %v1764, %v1812
        %v1911 = vmul.f32 %v1766, %v1814
        %v1912 = vmul.f32 %v1768, %v1816
        %v1913 = vmul.f32 %v1786, %v1786
        %v1914 = vmul.f32 %v1788, %v1788
        %v1915 = vmul.f32 %v1790, %v1790
        %v1916 = vmul.f32 %v1792, %v1792
        %v1917 = vmul.f32 %v1794, %v1794
        %v1918 = vmul.f32 %v1796, %v1796
        %v1919 = vmul.f32 %v1798, %v1798
        %v1920 = vmul.f32 %v1800, %v1800
        %v1921 = vmul.f32 %v1802, %v1802
        %v1922 = vmul.f32 %v1804, %v1804
        %v1923 = vmul.f32 %v1806, %v1806
        %v1924 = vmul.f32 %v1808, %v1808
        %v1925 = vmul.f32 %v1810, %v1810
        %v1926 = vmul.f32 %v1812, %v1812
        %v1927 = vmul.f32 %v1814, %v1814
        %v1928 = vmul.f32 %v1816, %v1816
        %v1929 = vmul.f32 %v1738, %v1913
        %v1930 = vmul.f32 %v1740, %v1914
        %v1931 = vmul.f32 %v1742, %v1915
        %v1932 = vmul.f32 %v1744, %v1916
        %v1933 = vmul.f32 %v1746, %v1917
        %v1934 = vmul.f32 %v1748, %v1918
        %v1935 = vmul.f32 %v1750, %v1919
        %v1936 = vmul.f32 %v1752, %v1920
        %v1937 = vmul.f32 %v1754, %v1921
        %v1938 = vmul.f32 %v1756, %v1922
        %v1939 = vmul.f32 %v1758, %v1923
        %v1940 = vmul.f32 %v1760, %v1924
        %v1941 = vmul.f32 %v1762, %v1925
        %v1942 = vmul.f32 %v1764, %v1926
        %v1943 = vmul.f32 %v1766, %v1927
        %v1944 = vmul.f32 %v1768, %v1928
        %v1945 = vld [vmem:[#allocation2] sm:$0xff]
        %v1946 = vld [vmem:[#allocation2 + $0x8] sm:$0xff]
        %v1947 = vld [vmem:[#allocation2 + $0x10] sm:$0xff]
        %v1948 = vld [vmem:[#allocation2 + $0x18] sm:$0xff]
        %v1949 = vld [vmem:[%s6] sm:$0xff]
        %v1950 = vld [vmem:[%s6 + $0x8] sm:$0xff]
        %1952 = vset.pattern.permute.xlu0 0
        %1953 = vperm.xlu0 %1952, %v1949
        %v1954 = vpop.permute.xlu0 %1953
        %1957 = vset.pattern.permute.xlu0 0
        %1958 = vperm.xlu0 %1957, %v1950
        %v1959 = vpop.permute.xlu0 %1958
        %vm1961 = vcmask 261120
        %v1963 = vsel %vm1961, %v1946, 0
        %v1966 = vsel %vm1961, %v1948, 0
        %1968 = vmatprep.subr.mxu0 %v1910
        %1969 = vmatpush1.msra.mxu0 %v1909
        %1970 = vmatprep.subr.mxu0 %v1906
        %1971 = vmatpush1.msra.mxu0 %v1905
        %1972 = vmatprep.subr.mxu0 %v1902
        %1973 = vmatpush1.msra.mxu0 %v1901
        %1974 = vmatprep.subr.mxu0 %v1898
        %1975 = vmatpush1.msra.mxu0 %v1897
        %1976 = vmatprep.subr.mxu0 %v1764
        %1977 = vmatpush1.msra.mxu0 %v1762
        %1978 = vmatprep.subr.mxu0 %v1756
        %1979 = vmatpush1.msra.mxu0 %v1754
        %1980 = vmatprep.subr.mxu0 %v1748
        %1981 = vmatpush1.msra.mxu0 %v1746
        %1982 = vmatprep.subr.mxu0 %v1740
        %1983 = vmatpush1.msra.mxu0 %v1738
        %1984 = vmatprep.subr.mxu0 %v1894
        %1985 = vmatpush1.msra.mxu0 %v1893
        %1986 = vmatprep.subr.mxu0 %v1890
        %1987 = vmatpush1.msra.mxu0 %v1889
        %1988 = vmatprep.subr.mxu0 %v1886
        %1989 = vmatpush1.msra.mxu0 %v1885
        %1990 = vmatprep.subr.mxu0 %v1882
        %1991 = vmatpush1.msra.mxu0 %v1881
        %1992 = vmatprep.subr.mxu0 %v1878
        %1993 = vmatpush1.msra.mxu0 %v1877
        %1994 = vmatprep.subr.mxu0 %v1874
        %1995 = vmatpush1.msra.mxu0 %v1873
        %1996 = vmatprep.subr.mxu0 %v1870
        %1997 = vmatpush1.msra.mxu0 %v1869
        %1998 = vmatprep.subr.mxu0 %v1866
        %1999 = vmatpush1.msra.mxu0 %v1865
        %2000 = vmatprep.subr.mxu0 0.0
        %2001 = vmatpush2.msra.mxu0 0.0
        %2002 = vmatprep.subr.mxu0 0.0
        %2003 = vmatpush2.msra.mxu0 0.0
        %2004 = vmatprep.subr.mxu0 0.0
        %2005 = vmatpush2.msra.mxu0 0.0
        %2006 = vmatprep.subr.mxu0 0.0
        %2007 = vmatpush2.msra.mxu0 0.0
        %2008 = vmatprep.subr.mxu0 0.0
        %2009 = vmatpush2.msra.mxu0 0.0
        %2010 = vmatprep.subr.mxu0 0.0
        %2011 = vmatpush2.msra.mxu0 0.0
        %2012 = vmatprep.subr.mxu0 0.0
        %2013 = vmatpush2.msra.mxu0 0.0
        %2014 = vmatprep.subr.mxu0 0.0
        %2015 = vmatpush2.msra.mxu0 0.0
        %2016 = vmatprep.subr.mxu0 0.0
        %2017 = vmatpush2.msra.mxu0 0.0
        %2018 = vmatprep.subr.mxu0 0.0
        %2019 = vmatpush2.msra.mxu0 0.0
        %2020 = vmatprep.subr.mxu0 0.0
        %2021 = vmatpush2.msra.mxu0 0.0
        %2022 = vmatprep.subr.mxu0 0.0
        %2023 = vmatpush2.msra.mxu0 0.0
        %2024 = vmatprep.subr.mxu0 %v1942
        %2025 = vmatpush2.msra.mxu0 %v1941
        %2026 = vmatprep.subr.mxu0 %v1938
        %2027 = vmatpush2.msra.mxu0 %v1937
        %2028 = vmatprep.subr.mxu0 %v1934
        %2029 = vmatpush2.msra.mxu0 %v1933
        %2030 = vmatprep.subr.mxu0 %v1930
        %2031 = vmatpush2.msra.mxu0 %v1929
        %2032 = vmatprep.mubr.f32.mxu0 %v1963
        %2033 = vmatmul.mubr.f32.gmra.mxu0 %v1945
        %v2034 = vpop.f32.mrf.mxu0
        %v2035 = vadd.f32 %v1954, %v2034
        %v2036 = vpop.f32.mrf.mxu0
        %v2037 = vadd.f32 %v1954, %v2036
        %2038 = vmatprep.mubr.f32.mxu0 %v1966
        %2039 = vmatmul.mubr.f32.gmra.mxu0 %v1947
        %v2040 = vpop.f32.mrf.mxu0
        %v2041 = vadd.f32 %v1959, %v2040
        %v2042 = vpop.f32.mrf.mxu0
        %v2043 = vadd.f32 %v1959, %v2042
        %2044 = vdwg.mxu0
        %2045 = vmatprep.subr.mxu0 %v1912
        %2046 = vmatpush1.msra.mxu0 %v1911
        %2047 = vmatprep.subr.mxu0 %v1908
        %2048 = vmatpush1.msra.mxu0 %v1907
        %2049 = vmatprep.subr.mxu0 %v1904
        %2050 = vmatpush1.msra.mxu0 %v1903
        %2051 = vmatprep.subr.mxu0 %v1900
        %2052 = vmatpush1.msra.mxu0 %v1899
        %2053 = vmatprep.subr.mxu0 %v1768
        %2054 = vmatpush1.msra.mxu0 %v1766
        %2055 = vmatprep.subr.mxu0 %v1760
        %2056 = vmatpush1.msra.mxu0 %v1758
        %2057 = vmatprep.subr.mxu0 %v1752
        %2058 = vmatpush1.msra.mxu0 %v1750
        %2059 = vmatprep.subr.mxu0 %v1744
        %2060 = vmatpush1.msra.mxu0 %v1742
        %2061 = vmatprep.subr.mxu0 %v1896
        %2062 = vmatpush1.msra.mxu0 %v1895
        %2063 = vmatprep.subr.mxu0 %v1892
        %2064 = vmatpush1.msra.mxu0 %v1891
        %2065 = vmatprep.subr.mxu0 %v1888
        %2066 = vmatpush1.msra.mxu0 %v1887
        %2067 = vmatprep.subr.mxu0 %v1884
        %2068 = vmatpush1.msra.mxu0 %v1883
        %2069 = vmatprep.subr.mxu0 %v1880
        %2070 = vmatpush1.msra.mxu0 %v1879
        %2071 = vmatprep.subr.mxu0 %v1876
        %2072 = vmatpush1.msra.mxu0 %v1875
        %2073 = vmatprep.subr.mxu0 %v1872
        %2074 = vmatpush1.msra.mxu0 %v1871
        %2075 = vmatprep.subr.mxu0 %v1868
        %2076 = vmatpush1.msra.mxu0 %v1867
        %2077 = vmatprep.subr.mxu0 0.0
        %2078 = vmatpush2.msra.mxu0 0.0
        %2079 = vmatprep.subr.mxu0 0.0
        %2080 = vmatpush2.msra.mxu0 0.0
        %2081 = vmatprep.subr.mxu0 0.0
        %2082 = vmatpush2.msra.mxu0 0.0
        %2083 = vmatprep.subr.mxu0 0.0
        %2084 = vmatpush2.msra.mxu0 0.0
        %2085 = vmatprep.subr.mxu0 0.0
        %2086 = vmatpush2.msra.mxu0 0.0
        %2087 = vmatprep.subr.mxu0 0.0
        %2088 = vmatpush2.msra.mxu0 0.0
        %2089 = vmatprep.subr.mxu0 0.0
        %2090 = vmatpush2.msra.mxu0 0.0
        %2091 = vmatprep.subr.mxu0 0.0
        %2092 = vmatpush2.msra.mxu0 0.0
        %2093 = vmatprep.subr.mxu0 0.0
        %2094 = vmatpush2.msra.mxu0 0.0
        %2095 = vmatprep.subr.mxu0 0.0
        %2096 = vmatpush2.msra.mxu0 0.0
        %2097 = vmatprep.subr.mxu0 0.0
        %2098 = vmatpush2.msra.mxu0 0.0
        %2099 = vmatprep.subr.mxu0 0.0
        %2100 = vmatpush2.msra.mxu0 0.0
        %2101 = vmatprep.subr.mxu0 %v1944
        %2102 = vmatpush2.msra.mxu0 %v1943
        %2103 = vmatprep.subr.mxu0 %v1940
        %2104 = vmatpush2.msra.mxu0 %v1939
        %2105 = vmatprep.subr.mxu0 %v1936
        %2106 = vmatpush2.msra.mxu0 %v1935
        %2107 = vmatprep.subr.mxu0 %v1932
        %2108 = vmatpush2.msra.mxu0 %v1931
        %2109 = vmatprep.mubr.f32.mxu0 %v1963
        %2110 = vmatmul.mubr.f32.gmra.mxu0 %v1945
        %v2111 = vpop.f32.mrf.mxu0
        %v2112 = vadd.f32 %v1954, %v2111
        %v2113 = vpop.f32.mrf.mxu0
        %v2114 = vadd.f32 %v1954, %v2113
        %2115 = vmatprep.mubr.f32.mxu0 %v1966
        %2116 = vmatmul.mubr.f32.gmra.mxu0 %v1947
        %v2117 = vpop.f32.mrf.mxu0
        %v2118 = vadd.f32 %v1959, %v2117
        %v2119 = vpop.f32.mrf.mxu0
        %v2120 = vadd.f32 %v1959, %v2119
        %2121 = vdwg.mxu0
        %v2122 = vtanh.pop %v2035
        %v2123 = vtanh.pop %v2037
        %v2124 = vtanh.pop %v2112
        %v2125 = vtanh.pop %v2114
        %v2126 = vtanh.pop %v2041
        %v2127 = vtanh.pop %v2043
        %v2128 = vtanh.pop %v2118
        %v2129 = vtanh.pop %v2120
        %v2130 = vtanh.pop %v2122
        %v2131 = vtanh.pop %v2123
        %v2132 = vtanh.pop %v2124
        %v2133 = vtanh.pop %v2125
        %v2134 = vtanh.pop %v2126
        %v2135 = vtanh.pop %v2127
        %v2136 = vtanh.pop %v2128
        %v2137 = vtanh.pop %v2129
        %v2138 = vmul.f32 %v2130, -5.0
        %v2139 = vmul.f32 %v2131, -5.0
        %v2140 = vmul.f32 %v2132, -5.0
        %v2141 = vmul.f32 %v2133, -5.0
        %v2142 = vmul.f32 %v2134, -5.0
        %v2143 = vmul.f32 %v2135, -5.0
        %v2144 = vmul.f32 %v2136, -5.0
        %v2145 = vmul.f32 %v2137, -5.0
        %v2146 = vmul.f32 %v2138, %v2130
        %v2147 = vmul.f32 %v2139, %v2131
        %v2148 = vmul.f32 %v2140, %v2132
        %v2149 = vmul.f32 %v2141, %v2133
        %v2150 = vmul.f32 %v2142, %v2134
        %v2151 = vmul.f32 %v2143, %v2135
        %v2152 = vmul.f32 %v2144, %v2136
        %v2153 = vmul.f32 %v2145, %v2137
        %v2154 = vmul.f32 %v2146, 1.442695
        %v2155 = vpow.pop %v2154
        %v2156 = vmul.f32 %v2147, 1.442695
        %v2157 = vpow.pop %v2156
        %v2158 = vmul.f32 %v2148, 1.442695
        %v2159 = vpow.pop %v2158
        %v2160 = vmul.f32 %v2149, 1.442695
        %v2161 = vpow.pop %v2160
        %v2162 = vmul.f32 %v2150, 1.442695
        %v2163 = vpow.pop %v2162
        %v2164 = vmul.f32 %v2151, 1.442695
        %v2165 = vpow.pop %v2164
        %v2166 = vmul.f32 %v2152, 1.442695
        %v2167 = vpow.pop %v2166
        %v2168 = vmul.f32 %v2153, 1.442695
        %v2169 = vpow.pop %v2168
        %v2170 = vmul.f32 %v2130, 5.0
        %v2171 = vmul.f32 %v2131, 5.0
        %v2172 = vmul.f32 %v2132, 5.0
        %v2173 = vmul.f32 %v2133, 5.0
        %v2174 = vmul.f32 %v2134, 5.0
        %v2175 = vmul.f32 %v2135, 5.0
        %v2176 = vmul.f32 %v2136, 5.0
        %v2177 = vmul.f32 %v2137, 5.0
        %v2178 = vmul.f32 %v2170, 1.442695
        %v2179 = vpow.pop %v2178
        %v2180 = vmul.f32 %v2171, 1.442695
        %v2181 = vpow.pop %v2180
        %v2182 = vmul.f32 %v2172, 1.442695
        %v2183 = vpow.pop %v2182
        %v2184 = vmul.f32 %v2173, 1.442695
        %v2185 = vpow.pop %v2184
        %v2186 = vmul.f32 %v2174, 1.442695
        %v2187 = vpow.pop %v2186
        %v2188 = vmul.f32 %v2175, 1.442695
        %v2189 = vpow.pop %v2188
        %v2190 = vmul.f32 %v2176, 1.442695
        %v2191 = vpow.pop %v2190
        %v2192 = vmul.f32 %v2177, 1.442695
        %v2193 = vpow.pop %v2192
        %v2194 = vmul.f32 %v2138, 1.442695
        %v2195 = vpow.pop %v2194
        %v2196 = vmul.f32 %v2139, 1.442695
        %v2197 = vpow.pop %v2196
        %v2198 = vmul.f32 %v2140, 1.442695
        %v2199 = vpow.pop %v2198
        %v2200 = vmul.f32 %v2141, 1.442695
        %v2201 = vpow.pop %v2200
        %v2202 = vmul.f32 %v2142, 1.442695
        %v2203 = vpow.pop %v2202
        %v2204 = vmul.f32 %v2143, 1.442695
        %v2205 = vpow.pop %v2204
        %v2206 = vmul.f32 %v2144, 1.442695
        %v2207 = vpow.pop %v2206
        %v2208 = vmul.f32 %v2145, 1.442695
        %v2209 = vpow.pop %v2208
        %v2210 = vmul.f32 %v2195, %v2195
        %v2211 = vmul.f32 %v2197, %v2197
        %v2212 = vmul.f32 %v2199, %v2199
        %v2213 = vmul.f32 %v2201, %v2201
        %v2214 = vmul.f32 %v2203, %v2203
        %v2215 = vmul.f32 %v2205, %v2205
        %v2216 = vmul.f32 %v2207, %v2207
        %v2217 = vmul.f32 %v2209, %v2209
        %v2218 = vmul.f32 %v2155, %v2210
        %v2219 = vmul.f32 %v2157, %v2211
        %v2220 = vmul.f32 %v2159, %v2212
        %v2221 = vmul.f32 %v2161, %v2213
        %v2222 = vmul.f32 %v2163, %v2214
        %v2223 = vmul.f32 %v2165, %v2215
        %v2224 = vmul.f32 %v2167, %v2216
        %v2225 = vmul.f32 %v2169, %v2217
        %v2226 = vmul.f32 %v2155, %v2195
        %v2227 = vmul.f32 %v2157, %v2197
        %v2228 = vmul.f32 %v2159, %v2199
        %v2229 = vmul.f32 %v2161, %v2201
        %v2230 = vmul.f32 %v2163, %v2203
        %v2231 = vmul.f32 %v2165, %v2205
        %v2232 = vmul.f32 %v2167, %v2207
        %v2233 = vmul.f32 %v2169, %v2209
        %v2234 = vmul.f32 %v2155, %v2179
        %v2235 = vmul.f32 %v2157, %v2181
        %v2236 = vmul.f32 %v2159, %v2183
        %v2237 = vmul.f32 %v2161, %v2185
        %v2238 = vmul.f32 %v2163, %v2187
        %v2239 = vmul.f32 %v2165, %v2189
        %v2240 = vmul.f32 %v2167, %v2191
        %v2241 = vmul.f32 %v2169, %v2193
        %v2242 = vmul.f32 %v2179, %v2179
        %v2243 = vmul.f32 %v2181, %v2181
        %v2244 = vmul.f32 %v2183, %v2183
        %v2245 = vmul.f32 %v2185, %v2185
        %v2246 = vmul.f32 %v2187, %v2187
        %v2247 = vmul.f32 %v2189, %v2189
        %v2248 = vmul.f32 %v2191, %v2191
        %v2249 = vmul.f32 %v2193, %v2193
        %v2250 = vmul.f32 %v2155, %v2242
        %v2251 = vmul.f32 %v2157, %v2243
        %v2252 = vmul.f32 %v2159, %v2244
        %v2253 = vmul.f32 %v2161, %v2245
        %v2254 = vmul.f32 %v2163, %v2246
        %v2255 = vmul.f32 %v2165, %v2247
        %v2256 = vmul.f32 %v2167, %v2248
        %v2257 = vmul.f32 %v2169, %v2249
        %v2258 = vld [vmem:[%s7] sm:$0xff]
        %v2259 = vld [vmem:[%s8] sm:$0xff]
        %2261 = vset.pattern.permute.xlu0 0
        %2262 = vperm.xlu0 %2261, %v2259
        %v2263 = vpop.permute.xlu0 %2262
        %vm2265 = vcmask 654336
        %v2267 = vsel %vm2265, %v2258, 0
        %2269 = vmatprep.subr.mxu0 0.0
        %2270 = vmatpush1.msra.mxu0 0.0
        %2271 = vmatprep.subr.mxu0 0.0
        %2272 = vmatpush1.msra.mxu0 0.0
        %2273 = vmatprep.subr.mxu0 0.0
        %2274 = vmatpush1.msra.mxu0 0.0
        %2275 = vmatprep.subr.mxu0 0.0
        %2276 = vmatpush1.msra.mxu0 0.0
        %2277 = vmatprep.subr.mxu0 0.0
        %2278 = vmatpush1.msra.mxu0 0.0
        %2279 = vmatprep.subr.mxu0 0.0
        %2280 = vmatpush1.msra.mxu0 0.0
        %2281 = vmatprep.subr.mxu0 %v2255
        %2282 = vmatpush1.msra.mxu0 %v2254
        %2283 = vmatprep.subr.mxu0 %v2251
        %2284 = vmatpush1.msra.mxu0 %v2250
        %2285 = vmatprep.subr.mxu0 %v2239
        %2286 = vmatpush1.msra.mxu0 %v2238
        %2287 = vmatprep.subr.mxu0 %v2235
        %2288 = vmatpush1.msra.mxu0 %v2234
        %2289 = vmatprep.subr.mxu0 %v2165
        %2290 = vmatpush1.msra.mxu0 %v2163
        %2291 = vmatprep.subr.mxu0 %v2157
        %2292 = vmatpush1.msra.mxu0 %v2155
        %2293 = vmatprep.subr.mxu0 %v2231
        %2294 = vmatpush1.msra.mxu0 %v2230
        %2295 = vmatprep.subr.mxu0 %v2227
        %2296 = vmatpush1.msra.mxu0 %v2226
        %2297 = vmatprep.subr.mxu0 %v2223
        %2298 = vmatpush1.msra.mxu0 %v2222
        %2299 = vmatprep.subr.mxu0 %v2219
        %2300 = vmatpush1.msra.mxu0 %v2218
        %2301 = vmatprep.subr.mxu0 0.0
        %2302 = vmatpush2.msra.mxu0 0.0
        %2303 = vmatprep.subr.mxu0 0.0
        %2304 = vmatpush2.msra.mxu0 0.0
        %2305 = vmatprep.subr.mxu0 0.0
        %2306 = vmatpush2.msra.mxu0 0.0
        %2307 = vmatprep.subr.mxu0 0.0
        %2308 = vmatpush2.msra.mxu0 0.0
        %2309 = vmatprep.subr.mxu0 0.0
        %2310 = vmatpush2.msra.mxu0 0.0
        %2311 = vmatprep.subr.mxu0 0.0
        %2312 = vmatpush2.msra.mxu0 0.0
        %2313 = vmatprep.subr.mxu0 0.0
        %2314 = vmatpush2.msra.mxu0 0.0
        %2315 = vmatprep.subr.mxu0 0.0
        %2316 = vmatpush2.msra.mxu0 0.0
        %2317 = vmatprep.subr.mxu0 0.0
        %2318 = vmatpush2.msra.mxu0 0.0
        %2319 = vmatprep.subr.mxu0 0.0
        %2320 = vmatpush2.msra.mxu0 0.0
        %2321 = vmatprep.subr.mxu0 0.0
        %2322 = vmatpush2.msra.mxu0 0.0
        %2323 = vmatprep.subr.mxu0 0.0
        %2324 = vmatpush2.msra.mxu0 0.0
        %2325 = vmatprep.subr.mxu0 0.0
        %2326 = vmatpush2.msra.mxu0 0.0
        %2327 = vmatprep.subr.mxu0 0.0
        %2328 = vmatpush2.msra.mxu0 0.0
        %2329 = vmatprep.subr.mxu0 0.0
        %2330 = vmatpush2.msra.mxu0 0.0
        %2331 = vmatprep.subr.mxu0 0.0
        %2332 = vmatpush2.msra.mxu0 0.0
        %2333 = vmatprep.mubr.f32.mxu0 0.0
        %2334 = vmatmul.mubr.f32.gmra.mxu0 %v2267
        %v2335 = vpop.f32.mrf.mxu0
        %v2336 = vadd.f32 %v2263, %v2335
        %v2337 = vpop.f32.mrf.mxu0
        %v2338 = vadd.f32 %v2263, %v2337
        %2339 = vdwg.mxu0
        %2340 = vmatprep.subr.mxu0 0.0
        %2341 = vmatpush1.msra.mxu0 0.0
        %2342 = vmatprep.subr.mxu0 0.0
        %2343 = vmatpush1.msra.mxu0 0.0
        %2344 = vmatprep.subr.mxu0 0.0
        %2345 = vmatpush1.msra.mxu0 0.0
        %2346 = vmatprep.subr.mxu0 0.0
        %2347 = vmatpush1.msra.mxu0 0.0
        %2348 = vmatprep.subr.mxu0 0.0
        %2349 = vmatpush1.msra.mxu0 0.0
        %2350 = vmatprep.subr.mxu0 0.0
        %2351 = vmatpush1.msra.mxu0 0.0
        %2352 = vmatprep.subr.mxu0 %v2257
        %2353 = vmatpush1.msra.mxu0 %v2256
        %2354 = vmatprep.subr.mxu0 %v2253
        %2355 = vmatpush1.msra.mxu0 %v2252
        %2356 = vmatprep.subr.mxu0 %v2241
        %2357 = vmatpush1.msra.mxu0 %v2240
        %2358 = vmatprep.subr.mxu0 %v2237
        %2359 = vmatpush1.msra.mxu0 %v2236
        %2360 = vmatprep.subr.mxu0 %v2169
        %2361 = vmatpush1.msra.mxu0 %v2167
        %2362 = vmatprep.subr.mxu0 %v2161
        %2363 = vmatpush1.msra.mxu0 %v2159
        %2364 = vmatprep.subr.mxu0 %v2233
        %2365 = vmatpush1.msra.mxu0 %v2232
        %2366 = vmatprep.subr.mxu0 %v2229
        %2367 = vmatpush1.msra.mxu0 %v2228
        %2368 = vmatprep.subr.mxu0 %v2225
        %2369 = vmatpush1.msra.mxu0 %v2224
        %2370 = vmatprep.subr.mxu0 %v2221
        %2371 = vmatpush1.msra.mxu0 %v2220
        %2372 = vmatprep.subr.mxu0 0.0
        %2373 = vmatpush2.msra.mxu0 0.0
        %2374 = vmatprep.subr.mxu0 0.0
        %2375 = vmatpush2.msra.mxu0 0.0
        %2376 = vmatprep.subr.mxu0 0.0
        %2377 = vmatpush2.msra.mxu0 0.0
        %2378 = vmatprep.subr.mxu0 0.0
        %2379 = vmatpush2.msra.mxu0 0.0
        %2380 = vmatprep.subr.mxu0 0.0
        %2381 = vmatpush2.msra.mxu0 0.0
        %2382 = vmatprep.subr.mxu0 0.0
        %2383 = vmatpush2.msra.mxu0 0.0
        %2384 = vmatprep.subr.mxu0 0.0
        %2385 = vmatpush2.msra.mxu0 0.0
        %2386 = vmatprep.subr.mxu0 0.0
        %2387 = vmatpush2.msra.mxu0 0.0
        %2388 = vmatprep.subr.mxu0 0.0
        %2389 = vmatpush2.msra.mxu0 0.0
        %2390 = vmatprep.subr.mxu0 0.0
        %2391 = vmatpush2.msra.mxu0 0.0
        %2392 = vmatprep.subr.mxu0 0.0
        %2393 = vmatpush2.msra.mxu0 0.0
        %2394 = vmatprep.subr.mxu0 0.0
        %2395 = vmatpush2.msra.mxu0 0.0
        %2396 = vmatprep.subr.mxu0 0.0
        %2397 = vmatpush2.msra.mxu0 0.0
        %2398 = vmatprep.subr.mxu0 0.0
        %2399 = vmatpush2.msra.mxu0 0.0
        %2400 = vmatprep.subr.mxu0 0.0
        %2401 = vmatpush2.msra.mxu0 0.0
        %2402 = vmatprep.subr.mxu0 0.0
        %2403 = vmatpush2.msra.mxu0 0.0
        %2404 = vmatprep.mubr.f32.mxu0 0.0
        %2405 = vmatmul.mubr.f32.gmra.mxu0 %v2267
        %v2406 = vpop.f32.mrf.mxu0
        %v2407 = vadd.f32 %v2263, %v2406
        %v2408 = vpop.f32.mrf.mxu0
        %v2409 = vadd.f32 %v2263, %v2408
        %2410 = vdwg.mxu0
        %2411 = vst [vmem:[%s341] sm:$0xff] %v2336
        %2412 = vst [vmem:[%s341 + $0x8] sm:$0xff] %v2338
        %2413 = vst [vmem:[%s341 + $0x10] sm:$0xff] %v2407
        %2414 = vst [vmem:[%s341 + $0x18] sm:$0xff] %v2409
        %s2415 = sand.u32 %s226, 1
        %s2416 = scalar_lea.sflag [#allocation4], %s2415
        %s2417 = sand.u32 %s226, 1
        %s2418 = smul.addr %s2417, 32
        %s2419 = scalar_lea.vmem [#allocation5], %s2418
        // Predicated region
        $region61: #{tpu_custom_call.1} parent=55 // pred_check
          %p2420 = pneg %p236
        $region62: #{tpu_custom_call.1} parent=55 // pred_check_branch
          %2422 = sbr.rel (%p2420) target = $region64
        $region63: #{tpu_custom_call.1} parent=55 // pred_region
          %s2423 = smul.u32 4, %s24
          %s2425 = ssub.s32 512, 512
          %2426 = vsyncadd %s2416, %s2425
          %s2427 = smul.addr %s2423, 128
          %s2428 = scalar_lea.hbm %s9, %s2427
          %s2430 = sshll.u32 %s2419, 4
          %s2431 = int_to_ptr.vmem [resolvable:$true] %s2430
          %2433 = dma.vmem_to_hbm [thread:$0]  %s2431, 512, %s2428, %s2416
        $region64: #{tpu_custom_call.1} parent=55 // pred_fallthru
          _
      $region56: #{tpu_custom_call.1} parent=5 // pred_fallthru
        _
      %p2434 = scmp.le.s32.totalorder 2, %s19
      // Predicated region
      $region65: #{tpu_custom_call.1} parent=5 // pred_check
        %p2435 = pneg %p2434
      $region66: #{tpu_custom_call.1} parent=5 // pred_check_branch
        %2437 = sbr.rel (%p2435) target = $region68
      $region67: #{tpu_custom_call.1} parent=5 // pred_region
        %s2438 = ssub.s32 %s19, 2
        // Predicated region
        $region69: #{tpu_custom_call.1} parent=67 // pred_check
          %p2439 = pneg %p242
        $region70: #{tpu_custom_call.1} parent=67 // pred_check_branch
          %2441 = sbr.rel (%p2439) target = $region72
        $region71: #{tpu_custom_call.1} parent=67 // pred_region
          %s2442 = sand.u32 %s227, 1
          %s2443 = scalar_lea.sflag [#allocation4], %s2442
          %s2444 = sand.u32 %s227, 1
          %s2445 = smul.addr %s2444, 32
          %s2446 = scalar_lea.vmem [#allocation5], %s2445
          %2447 = dma.done %s2443, 512
        $region72: #{tpu_custom_call.1} parent=67 // pred_fallthru
          _
      $region68: #{tpu_custom_call.1} parent=5 // pred_fallthru
        _
    $region6: #{tpu_custom_call.1} parent=1 // loop_footer
      %s23 = sadd.s32 1, %s19
    $region7: #{tpu_custom_call.1} parent=1 // loop_footer_branch
      %18 = sbr.rel target = $region3
    $region8: #{tpu_custom_call.1} parent=1 // loop_exit
      _
    %2448 = vsyncpa [#allocation3], 1
    %s2449 = scalar_lea.sflag [#allocation3], 1
    %2450 = vsyncpa %s2449, 1
    %2451 = vsyncpa [#allocation4], 1
    %s2452 = scalar_lea.sflag [#allocation4], 1
    %2453 = vsyncpa %s2452, 1

</llo_original>
